<compile_context>
chip_gen: v6e
topology: v6e:2x2x1
jax: 0.10.0
libtpu: 0.0.40
codegen_flags: <defaults>
</compile_context>

<pallas_src>
import functools
from typing import NamedTuple

import jax
import jax.numpy as jnp
from jax.experimental import pallas as pl
from jax.experimental.pallas import tpu as pltpu

_LANE = 128


def _round_up(n, m):
    return ((n + m - 1) // m) * m


def _pad2(a, rows, cols):
    return jnp.pad(a, ((0, rows - a.shape[0]), (0, cols - a.shape[1])))


def _vmem_capacity_bytes():
    try:
        return int(pltpu.get_tpu_info().vmem_capacity_bytes)
    except Exception:
        return 128 * 1024 * 1024  # conservative default (v5e/v6e)


# ----------------------------- kernels --------------------------------------


def _resident_kernel(*refs, has_proj):
    """All weights resident in VMEM; one grid axis over batch tiles."""
    if has_proj:
        x_ref, w1_ref, b1_ref, w2_ref, b2_ref, w3_ref, b3_ref, wr_ref, o_ref = refs
        x = x_ref[...]                      # bf16 tile (DMA'd as bf16)
        x_res = None
    else:
        x_ref, w1_ref, b1_ref, w2_ref, b2_ref, w3_ref, b3_ref, o_ref = refs
        x_res = x_ref[...]                  # f32 tile (identity residual)
        x = x_res.astype(jnp.bfloat16)

    h1 = jnp.dot(x, w1_ref[...], preferred_element_type=jnp.float32) + b1_ref[...]
    h1 = jnp.maximum(h1, 0.0).astype(jnp.bfloat16)                  # ReLU
    h2 = jnp.dot(h1, w2_ref[...], preferred_element_type=jnp.float32) + b2_ref[...]
    h2 = jnp.maximum(h2, 0.0).astype(jnp.bfloat16)                  # ReLU
    out = jnp.dot(h2, w3_ref[...], preferred_element_type=jnp.float32) + b3_ref[...]
    if has_proj:
        out = out + jnp.dot(x, wr_ref[...], preferred_element_type=jnp.float32)
    else:
        out = out + x_res
    o_ref[...] = out.astype(o_ref.dtype)


def _chunked_kernel(*refs, has_proj):
    """w2/w3 streamed in d2 chunks (grid axis 1, 'arbitrary', last).

    h1 is computed once per batch tile (k==0) into a VMEM scratch; the third
    matmul accumulates into a f32 VMEM scratch; bias/residual/store at k==last.
    """
    if has_proj:
        (x_ref, w1_ref, b1_ref, w2_ref, b2_ref, w3_ref, b3_ref, wr_ref,
         o_ref, h1_scr, acc_scr) = refs
    else:
        (x_ref, w1_ref, b1_ref, w2_ref, b2_ref, w3_ref, b3_ref,
         o_ref, h1_scr, acc_scr) = refs

    k = pl.program_id(1)

    @pl.when(k == 0)
    def _():
        if has_proj:
            x = x_ref[...]                              # bf16
        else:
            x = x_ref[...].astype(jnp.bfloat16)
        h1 = jnp.dot(x, w1_ref[...], preferred_element_type=jnp.float32) + b1_ref[...]
        h1_scr[...] = jnp.maximum(h1, 0.0).astype(jnp.bfloat16)     # ReLU
        acc_scr[...] = jnp.zeros_like(acc_scr)

    h2 = jnp.dot(h1_scr[...], w2_ref[...], preferred_element_type=jnp.float32) + b2_ref[...]
    h2 = jnp.maximum(h2, 0.0).astype(jnp.bfloat16)                  # ReLU
    acc_scr[...] += jnp.dot(h2, w3_ref[...], preferred_element_type=jnp.float32)

    @pl.when(k == pl.num_programs(1) - 1)
    def _():
        out = acc_scr[...] + b3_ref[...]
        if has_proj:
            out = out + jnp.dot(x_ref[...], wr_ref[...],
                                preferred_element_type=jnp.float32)
        else:
            out = out + x_ref[...]                      # f32 identity residual
        o_ref[...] = out.astype(o_ref.dtype)


# --------------------------- param preparation --------------------------------


class NNLayerMeta(NamedTuple):
    dim_in: int
    dim_1: int
    dim_2: int
    dim_out: int
    din_p: int
    d1_p: int
    d2_p: int
    dout_p: int
    has_proj: bool


def prepare_nnlayer_params(params):
    """One-time weight prep: pad feature dims to multiples of 128, cast matmul
    operands to bf16, fold the residual bias into b3. Call once, reuse."""
    dim_in, dim_1 = params["w1"].shape
    dim_2 = params["w2"].shape[1]
    dim_out = params["w3"].shape[1]
    has_proj = "wr" in params

    din_p = _round_up(dim_in, _LANE)
    d1_p = _round_up(dim_1, _LANE)
    d2_p = _round_up(dim_2, _LANE)
    dout_p = _round_up(dim_out, _LANE)

    b3 = params["b3"] + params["br"] if has_proj else params["b3"]
    prepared = {
        "w1": _pad2(params["w1"], din_p, d1_p).astype(jnp.bfloat16),
        "b1": _pad2(params["b1"], 1, d1_p).astype(jnp.float32),
        "w2": _pad2(params["w2"], d1_p, d2_p).astype(jnp.bfloat16),
        "b2": _pad2(params["b2"], 1, d2_p).astype(jnp.float32),
        "w3": _pad2(params["w3"], d2_p, dout_p).astype(jnp.bfloat16),
        "b3": _pad2(b3, 1, dout_p).astype(jnp.float32),
    }
    if has_proj:
        prepared["wr"] = _pad2(params["wr"], din_p, dout_p).astype(jnp.bfloat16)

    meta = NNLayerMeta(dim_in, dim_1, dim_2, dim_out,
                       din_p, d1_p, d2_p, dout_p, has_proj)
    return prepared, meta


# ----------------------------- sizing helpers ---------------------------------


def _resident_weight_bytes(m):
    wb = (m.din_p * m.d1_p + m.d1_p * m.d2_p + m.d2_p * m.dout_p) * 2
    wb += (m.d1_p + m.d2_p + m.dout_p) * 4
    if m.has_proj:
        wb += m.din_p * m.dout_p * 2
    return wb


def _resident_vmem_bytes(block_b, m, x_bytes, out_bytes):
    tiles = 2 * block_b * m.din_p * x_bytes + 2 * block_b * m.dout_p * out_bytes
    interm = block_b * m.d1_p * 6 + block_b * m.d2_p * 6 + block_b * m.dout_p * 4
    if m.has_proj:
        interm += block_b * m.dout_p * 4
    return _resident_weight_bytes(m) + tiles + interm + (1 << 20)


def _chunked_vmem_bytes(block_b, d2_chunk, m, x_bytes, out_bytes):
    resident = m.din_p * m.d1_p * 2 + (m.d1_p + m.dout_p) * 4
    if m.has_proj:
        resident += m.din_p * m.dout_p * 2
    streamed = 2 * (m.d1_p * d2_chunk * 2 + d2_chunk * m.dout_p * 2 + d2_chunk * 4)
    tiles = 2 * block_b * m.din_p * x_bytes + 2 * block_b * m.dout_p * out_bytes
    scratch = block_b * m.d1_p * 2 + block_b * m.dout_p * 4
    interm = block_b * d2_chunk * 6 + block_b * m.d1_p * 4 + 2 * block_b * m.dout_p * 4
    return resident + streamed + tiles + scratch + interm + (1 << 20)


def _pick_d2_chunk(d2_p, target=2048):
    """Largest multiple-of-128 divisor of d2_p not exceeding `target`."""
    n = d2_p // _LANE
    best = 1
    for g in range(1, n + 1):
        if n % g == 0 and g * _LANE <= target:
            best = g
    return best * _LANE


# ----------------------------- wrapper ----------------------------------------


@functools.partial(jax.jit,
                   static_argnames=("meta", "block_b", "d2_chunk", "out_dtype"))
def nnlayer_forward_prepared(x, prepared, meta, block_b=None, d2_chunk=None,
                             out_dtype=jnp.float32):
    """Fused NNLayer forward from prepared (padded, bf16) params.

    x        : (B, dim_in) float32
    prepared : dict from prepare_nnlayer_params
    meta     : NNLayerMeta (static)
    block_b  : batch tile; None -> auto (128/256/512 from VMEM budget)
    d2_chunk : None -> auto strategy; int -> force K-chunked path with this chunk
    """
    m = meta
    B, dim_in = x.shape
    assert dim_in == m.dim_in, "x feature dim does not match params"

    budget = int(0.85 * _vmem_capacity_bytes())   # headroom for Mosaic scratch
    x_dtype = jnp.bfloat16 if m.has_proj else jnp.float32
    x_bytes = 2 if m.has_proj else 4
    out_bytes = jnp.dtype(out_dtype).itemsize

    resident_wb = _resident_weight_bytes(m)
    use_chunked = (d2_chunk is not None) or (resident_wb > int(0.4 * budget))
    if use_chunked:
        if d2_chunk is None:
            d2_chunk = _pick_d2_chunk(m.d2_p)
        if d2_chunk % _LANE or m.d2_p % d2_chunk:
            raise ValueError("d2_chunk must be a multiple of 128 dividing padded dim_2")

    # --- pick batch tile: largest that fits VMEM, >=2 tiles when batch allows
    if block_b is None:
        block_b = _LANE
        bcap = max(_LANE, _round_up(B, _LANE))
        for cand in (512, 256, 128):
            if cand > bcap:
                continue
            if B > 2 * _LANE and _round_up(B, cand) // cand < 2:
                continue  # keep >=2 batch tiles so v7x's 2nd TensorCore has work
            est = (_chunked_vmem_bytes(cand, d2_chunk, m, x_bytes, out_bytes)
                   if use_chunked else
                   _resident_vmem_bytes(cand, m, x_bytes, out_bytes))
            if est <= budget:
                block_b = cand
                break

    Bp = _round_up(B, block_b)

    # Pad / cast x (bf16 on proj path halves x DMA; f32 kept for identity residual).
    xp = x.astype(x_dtype)
    if Bp != B or m.din_p != m.dim_in:
        xp = _pad2(xp, Bp, m.din_p)

    flops = 2 * Bp * (m.din_p * m.d1_p + m.d1_p * m.d2_p + m.d2_p * m.dout_p
                      + (m.din_p * m.dout_p if m.has_proj else 0))
    io_bytes = Bp * (m.din_p * x_bytes + m.dout_p * out_bytes)

    vmem_full = pl.BlockSpec(memory_space=pltpu.MemorySpace.VMEM)

    if not use_chunked:
        # ---------- resident-weight path (single grid axis over batch) --------
        weights = [prepared["w1"], prepared["b1"], prepared["w2"],
                   prepared["b2"], prepared["w3"], prepared["b3"]]
        if m.has_proj:
            weights.append(prepared["wr"])

        grid = (Bp // block_b,)
        in_specs = ([pl.BlockSpec((block_b, m.din_p), lambda i: (i, 0))]
                    + [vmem_full] * len(weights))
        out_specs = pl.BlockSpec((block_b, m.dout_p), lambda i: (i, 0))
        kernel = functools.partial(_resident_kernel, has_proj=m.has_proj)

        vmem_limit = int(min(max(_resident_vmem_bytes(block_b, m, x_bytes, out_bytes),
                                 32 << 20), budget))
        bytes_accessed = int(io_bytes + resident_wb)

        out = pl.pallas_call(
            kernel,
            out_shape=jax.ShapeDtypeStruct((Bp, m.dout_p), out_dtype),
            grid_spec=pltpu.PrefetchScalarGridSpec(
                num_scalar_prefetch=0, grid=grid,
                in_specs=in_specs, out_specs=out_specs),
            compiler_params=pltpu.CompilerParams(
                dimension_semantics=("parallel",),
                vmem_limit_bytes=vmem_limit),
            cost_estimate=pl.CostEstimate(
                flops=flops, transcendentals=0, bytes_accessed=bytes_accessed),
        )(xp, *weights)
    else:
        # ---------- K-chunked path: stream w2/w3 over d2 chunks ---------------
        n_k = m.d2_p // d2_chunk
        grid = (Bp // block_b, n_k)

        x_spec = pl.BlockSpec((block_b, m.din_p), lambda i, k: (i, 0))
        w2_spec = pl.BlockSpec((m.d1_p, d2_chunk), lambda i, k: (0, k))
        b2_spec = pl.BlockSpec((1, d2_chunk), lambda i, k: (0, k))
        w3_spec = pl.BlockSpec((d2_chunk, m.dout_p), lambda i, k: (k, 0))
        out_specs = pl.BlockSpec((block_b, m.dout_p), lambda i, k: (i, 0))

        in_specs = [x_spec, vmem_full, vmem_full, w2_spec, b2_spec, w3_spec, vmem_full]
        inputs = [xp, prepared["w1"], prepared["b1"], prepared["w2"],
                  prepared["b2"], prepared["w3"], prepared["b3"]]
        if m.has_proj:
            in_specs.append(vmem_full)
            inputs.append(prepared["wr"])

        scratch = [pltpu.VMEM((block_b, m.d1_p), jnp.bfloat16),   # h1
                   pltpu.VMEM((block_b, m.dout_p), jnp.float32)]  # org accumulator
        kernel = functools.partial(_chunked_kernel, has_proj=m.has_proj)

        vmem_limit = int(min(max(_chunked_vmem_bytes(block_b, d2_chunk, m,
                                                     x_bytes, out_bytes),
                                 32 << 20), budget))
        # w2/w3 are re-streamed once per batch tile.
        stream_bytes = (Bp // block_b) * (m.d1_p * m.d2_p + m.d2_p * m.dout_p) * 2
        bytes_accessed = int(io_bytes + stream_bytes + m.din_p * m.d1_p * 2)

        out = pl.pallas_call(
            kernel,
            out_shape=jax.ShapeDtypeStruct((Bp, m.dout_p), out_dtype),
            grid_spec=pltpu.PrefetchScalarGridSpec(
                num_scalar_prefetch=0, grid=grid,
                in_specs=in_specs, out_specs=out_specs,
                scratch_shapes=scratch),
            compiler_params=pltpu.CompilerParams(
                dimension_semantics=("parallel", "arbitrary"),
                vmem_limit_bytes=vmem_limit),
            cost_estimate=pl.CostEstimate(
                flops=flops, transcendentals=0, bytes_accessed=bytes_accessed),
        )(*inputs)

    if Bp == B and m.dout_p == m.dim_out:
        return out                      # no padding -> skip the slice copy
    return out[:B, :m.dim_out]


def nnlayer_forward(x, params, **kwargs):
    """Convenience wrapper (re-prepares params every call; prefer calling
    prepare_nnlayer_params once and nnlayer_forward_prepared per step)."""
    prepared, meta = prepare_nnlayer_params(params)
    return nnlayer_forward_prepared(x, prepared, meta, **kwargs)


# ------------------------- deterministic params -------------------------------


def init_nnlayer_params(key, dim_in, dim_out):
    """Deterministic init mimicking torch.nn.Linear default (uniform +-1/sqrt(fan_in))."""
    dim_1 = dim_in * 4
    dim_2 = dim_1 * 4

    def linear(k, fan_in, fan_out):
        kw, kb = jax.random.split(k)
        bound = 1.0 / jnp.sqrt(fan_in)
        w = jax.random.uniform(kw, (fan_in, fan_out), jnp.float32, -bound, bound)
        b = jax.random.uniform(kb, (1, fan_out), jnp.float32, -bound, bound)
        return w, b

    keys = jax.random.split(key, 4)
    w1, b1 = linear(keys[0], dim_in, dim_1)
    w2, b2 = linear(keys[1], dim_1, dim_2)
    w3, b3 = linear(keys[2], dim_2, dim_out)
    params = dict(w1=w1, b1=b1, w2=w2, b2=b2, w3=w3, b3=b3)
    if dim_in != dim_out:
        wr, br = linear(keys[3], dim_in, dim_out)
        params.update(wr=wr, br=br)
    return params


def nnlayer_reference(x, params, match_kernel_dtype=True):
    """Pure-JAX reference. match_kernel_dtype=True mimics the kernel's bf16
    matmul operands with f32 accumulation (for a tight comparison)."""
    def mm(a, w):
        if match_kernel_dtype:
            a = a.astype(jnp.bfloat16)
            w = w.astype(jnp.bfloat16)
        return jnp.dot(a, w, preferred_element_type=jnp.float32)

    relu = lambda v: jnp.maximum(v, 0.0)
    h = relu(mm(x, params["w1"]) + params["b1"])
    h = relu(mm(h, params["w2"]) + params["b2"])
    org = mm(h, params["w3"]) + params["b3"]
    if "wr" in params:
        return mm(x, params["wr"]) + params["br"] + org
    return x + org


# ----------------------------------- main -------------------------------------


if __name__ == "__main__":
    key = jax.random.PRNGKey(0)
    kx, kp1, kp2 = jax.random.split(key, 3)

    B, dim_in, dim_out = 8, 32, 16
    x = jax.random.normal(kx, (B, dim_in), jnp.float32)

    # Case 1: dim_in != dim_out -> residual Linear path (resident-weight kernel).
    params = init_nnlayer_params(kp1, dim_in, dim_out)
    prep1, meta1 = prepare_nnlayer_params(params)
    out = jax.block_until_ready(nnlayer_forward_prepared(x, prep1, meta1))
    assert out.shape == (B, dim_out)
    ref_m = nnlayer_reference(x, params, match_kernel_dtype=True)
    ref_f = nnlayer_reference(x, params, match_kernel_dtype=False)
    assert jnp.allclose(out, ref_m, atol=2e-2, rtol=2e-2)   # matches kernel numerics
    assert jnp.allclose(out, ref_f, atol=1e-1, rtol=1e-1)   # close to full-f32 semantics

    # Case 2: dim_in == dim_out -> identity residual (resident-weight kernel).
    params2 = init_nnlayer_params(kp2, dim_in, dim_in)
    prep2, meta2 = prepare_nnlayer_params(params2)
    out2 = jax.block_until_ready(nnlayer_forward_prepared(x, prep2, meta2))
    assert out2.shape == (B, dim_in)
    ref2_m = nnlayer_reference(x, params2, match_kernel_dtype=True)
    ref2_f = nnlayer_reference(x, params2, match_kernel_dtype=False)
    assert jnp.allclose(out2, ref2_m, atol=2e-2, rtol=2e-2)
    assert jnp.allclose(out2, ref2_f, atol=1e-1, rtol=1e-1)

    # Case 3 & 4: force the K-chunked (streamed w2/w3) path at small shapes to
    # verify the large-dim_in fallback is correct on both residual variants.
    out3 = jax.block_until_ready(
        nnlayer_forward_prepared(x, prep1, meta1, d2_chunk=256))
    assert jnp.allclose(out3, ref_m, atol=2e-2, rtol=2e-2)
    out4 = jax.block_until_ready(
        nnlayer_forward_prepared(x, prep2, meta2, d2_chunk=256))
    assert jnp.allclose(out4, ref2_m, atol=2e-2, rtol=2e-2)

    print("KERNEL_OK")
</pallas_src>

<mosaic_0001>
module attributes {stable_mosaic.version = 11 : i64} {
  func.func @_resident_kernel(%arg0: i32, %arg1: memref<128x128xbf16, #tpu.memory_space<vmem>>, %arg2: memref<128x128xbf16, #tpu.memory_space<vmem>>, %arg3: memref<1x128xf32, #tpu.memory_space<vmem>>, %arg4: memref<128x512xbf16, #tpu.memory_space<vmem>>, %arg5: memref<1x512xf32, #tpu.memory_space<vmem>>, %arg6: memref<512x128xbf16, #tpu.memory_space<vmem>>, %arg7: memref<1x128xf32, #tpu.memory_space<vmem>>, %arg8: memref<128x128xbf16, #tpu.memory_space<vmem>>, %arg9: memref<128x128xf32, #tpu.memory_space<vmem>>) attributes {dimension_semantics = [#tpu.dimension_semantics<parallel>], iteration_bounds = array<i64: 1>, scalar_prefetch = 0 : i64, scratch_operands = 0 : i64, tpu.core_type = #tpu.core_type<tc>, window_params = [{transform_indices = @transform_0, window_bounds = array<i64: 128, 128>}, {pipeline_mode = #tpu.pipeline_mode<synchronous>, transform_indices = @transform_1, window_bounds = array<i64: 128, 128>}, {pipeline_mode = #tpu.pipeline_mode<synchronous>, transform_indices = @transform_2, window_bounds = array<i64: 1, 128>}, {pipeline_mode = #tpu.pipeline_mode<synchronous>, transform_indices = @transform_3, window_bounds = array<i64: 128, 512>}, {pipeline_mode = #tpu.pipeline_mode<synchronous>, transform_indices = @transform_4, window_bounds = array<i64: 1, 512>}, {pipeline_mode = #tpu.pipeline_mode<synchronous>, transform_indices = @transform_5, window_bounds = array<i64: 512, 128>}, {pipeline_mode = #tpu.pipeline_mode<synchronous>, transform_indices = @transform_6, window_bounds = array<i64: 1, 128>}, {pipeline_mode = #tpu.pipeline_mode<synchronous>, transform_indices = @transform_7, window_bounds = array<i64: 128, 128>}, {transform_indices = @transform_8, window_bounds = array<i64: 128, 128>}]} {
    %c0 = arith.constant 0 : index
    %c0_0 = arith.constant 0 : index
    %0 = vector.load %arg1[%c0, %c0_0] : memref<128x128xbf16, #tpu.memory_space<vmem>>, vector<128x128xbf16>
    %c0_1 = arith.constant 0 : index
    %c0_2 = arith.constant 0 : index
    %1 = vector.load %arg2[%c0_1, %c0_2] : memref<128x128xbf16, #tpu.memory_space<vmem>>, vector<128x128xbf16>
    %cst = arith.constant dense<0.000000e+00> : vector<128x128xf32>
    %2 = tpu.matmul %0, %1, %cst {dimension_numbers = #tpu.dot_dimension_numbers<[1], [0], [0], [1], [0, 0, 1, 1], [], []>} : vector<128x128xbf16>, vector<128x128xbf16>, vector<128x128xf32> -> vector<128x128xf32>
    %c0_3 = arith.constant 0 : index
    %c0_4 = arith.constant 0 : index
    %3 = vector.load %arg3[%c0_3, %c0_4] : memref<1x128xf32, #tpu.memory_space<vmem>>, vector<1x128xf32>
    %4 = vector.broadcast %3 : vector<1x128xf32> to vector<128x128xf32>
    %5 = arith.addf %2, %4 : vector<128x128xf32>
    %cst_5 = arith.constant 0.000000e+00 : f32
    %6 = vector.broadcast %cst_5 : f32 to vector<128x128xf32>
    %7 = arith.maximumf %5, %6 : vector<128x128xf32>
    %8 = arith.truncf %7 : vector<128x128xf32> to vector<128x128xbf16>
    %c0_6 = arith.constant 0 : index
    %c0_7 = arith.constant 0 : index
    %9 = vector.load %arg4[%c0_6, %c0_7] : memref<128x512xbf16, #tpu.memory_space<vmem>>, vector<128x512xbf16>
    %cst_8 = arith.constant dense<0.000000e+00> : vector<128x512xf32>
    %10 = tpu.matmul %8, %9, %cst_8 {dimension_numbers = #tpu.dot_dimension_numbers<[1], [0], [0], [1], [0, 0, 1, 1], [], []>} : vector<128x128xbf16>, vector<128x512xbf16>, vector<128x512xf32> -> vector<128x512xf32>
    %c0_9 = arith.constant 0 : index
    %c0_10 = arith.constant 0 : index
    %11 = vector.load %arg5[%c0_9, %c0_10] : memref<1x512xf32, #tpu.memory_space<vmem>>, vector<1x512xf32>
    %12 = vector.broadcast %11 : vector<1x512xf32> to vector<128x512xf32>
    %13 = arith.addf %10, %12 : vector<128x512xf32>
    %cst_11 = arith.constant 0.000000e+00 : f32
    %14 = vector.broadcast %cst_11 : f32 to vector<128x512xf32>
    %15 = arith.maximumf %13, %14 : vector<128x512xf32>
    %16 = arith.truncf %15 : vector<128x512xf32> to vector<128x512xbf16>
    %c0_12 = arith.constant 0 : index
    %c0_13 = arith.constant 0 : index
    %17 = vector.load %arg6[%c0_12, %c0_13] : memref<512x128xbf16, #tpu.memory_space<vmem>>, vector<512x128xbf16>
    %cst_14 = arith.constant dense<0.000000e+00> : vector<128x128xf32>
    %18 = tpu.matmul %16, %17, %cst_14 {dimension_numbers = #tpu.dot_dimension_numbers<[1], [0], [0], [1], [0, 0, 1, 1], [], []>} : vector<128x512xbf16>, vector<512x128xbf16>, vector<128x128xf32> -> vector<128x128xf32>
    %c0_15 = arith.constant 0 : index
    %c0_16 = arith.constant 0 : index
    %19 = vector.load %arg7[%c0_15, %c0_16] : memref<1x128xf32, #tpu.memory_space<vmem>>, vector<1x128xf32>
    %20 = vector.broadcast %19 : vector<1x128xf32> to vector<128x128xf32>
    %21 = arith.addf %18, %20 : vector<128x128xf32>
    %c0_17 = arith.constant 0 : index
    %c0_18 = arith.constant 0 : index
    %22 = vector.load %arg8[%c0_17, %c0_18] : memref<128x128xbf16, #tpu.memory_space<vmem>>, vector<128x128xbf16>
    %cst_19 = arith.constant dense<0.000000e+00> : vector<128x128xf32>
    %23 = tpu.matmul %0, %22, %cst_19 {dimension_numbers = #tpu.dot_dimension_numbers<[1], [0], [0], [1], [0, 0, 1, 1], [], []>} : vector<128x128xbf16>, vector<128x128xbf16>, vector<128x128xf32> -> vector<128x128xf32>
    %24 = arith.addf %21, %23 : vector<128x128xf32>
    %c0_20 = arith.constant 0 : index
    %c0_21 = arith.constant 0 : index
    %25 = vector.load %arg9[%c0_20, %c0_21] : memref<128x128xf32, #tpu.memory_space<vmem>>, vector<128x128xf32>
    tpu.vector_store %arg9[%c0_20, %c0_21], %24 {strides = array<i32>} : memref<128x128xf32, #tpu.memory_space<vmem>>, vector<128x128xf32>,
    return
  }
  func.func @transform_0(%arg0: i32) -> (i32, i32) {
    %c0_i32 = arith.constant 0 : i32
    %c0_i32_0 = arith.constant 0 : i32
    return %arg0, %c0_i32 : i32, i32
  }
  func.func @transform_1(%arg0: i32) -> (i32, i32) {
    %c0_i32 = arith.constant 0 : i32
    %c0_i32_0 = arith.constant 0 : i32
    %c0_i32_1 = arith.constant 0 : i32
    return %c0_i32, %c0_i32_0 : i32, i32
  }
  func.func @transform_2(%arg0: i32) -> (i32, i32) {
    %c0_i32 = arith.constant 0 : i32
    %c0_i32_0 = arith.constant 0 : i32
    %c0_i32_1 = arith.constant 0 : i32
    return %c0_i32, %c0_i32_0 : i32, i32
  }
  func.func @transform_3(%arg0: i32) -> (i32, i32) {
    %c0_i32 = arith.constant 0 : i32
    %c0_i32_0 = arith.constant 0 : i32
    %c0_i32_1 = arith.constant 0 : i32
    return %c0_i32, %c0_i32_0 : i32, i32
  }
  func.func @transform_4(%arg0: i32) -> (i32, i32) {
    %c0_i32 = arith.constant 0 : i32
    %c0_i32_0 = arith.constant 0 : i32
    %c0_i32_1 = arith.constant 0 : i32
    return %c0_i32, %c0_i32_0 : i32, i32
  }
  func.func @transform_5(%arg0: i32) -> (i32, i32) {
    %c0_i32 = arith.constant 0 : i32
    %c0_i32_0 = arith.constant 0 : i32
    %c0_i32_1 = arith.constant 0 : i32
    return %c0_i32, %c0_i32_0 : i32, i32
  }
  func.func @transform_6(%arg0: i32) -> (i32, i32) {
    %c0_i32 = arith.constant 0 : i32
    %c0_i32_0 = arith.constant 0 : i32
    %c0_i32_1 = arith.constant 0 : i32
    return %c0_i32, %c0_i32_0 : i32, i32
  }
  func.func @transform_7(%arg0: i32) -> (i32, i32) {
    %c0_i32 = arith.constant 0 : i32
    %c0_i32_0 = arith.constant 0 : i32
    %c0_i32_1 = arith.constant 0 : i32
    return %c0_i32, %c0_i32_0 : i32, i32
  }
  func.func @transform_8(%arg0: i32) -> (i32, i32) {
    %c0_i32 = arith.constant 0 : i32
    %c0_i32_0 = arith.constant 0 : i32
    return %arg0, %c0_i32 : i32, i32
  }
}

</mosaic_0001>

<llo_original>
// kernel: nnlayer_forward_prepared.1
$region0: #{nnlayer_forward_prepared.1}
  #allocation0 [shape = 'u32[]', space=smem, size = 0x4, offset = 0x4, fixed_abs, tag = 'smem constant byte address 0x4 - core index']
  #allocation1 [shape = 'u32[144,128]{1,0:T(1,128)}', space=vmem, size = 0x12000, scoped, tag = 'internal scratch']
  %s0 = inlined_call_operand.vmem [shape: bf16[128,128], index: 0, kind: input, shape index: {}]
  %s1 = inlined_call_operand.vmem [shape: bf16[128,128], index: 1, kind: input, shape index: {}]
  %s2 = inlined_call_operand.vmem [shape: f32[1,128], index: 2, kind: input, shape index: {}]
  %s3 = inlined_call_operand.hbm [shape: bf16[128,512], index: 3, kind: input, shape index: {}]
  %s4 = inlined_call_operand.vmem [shape: f32[1,512], index: 4, kind: input, shape index: {}]
  %s5 = inlined_call_operand.hbm [shape: bf16[512,128], index: 5, kind: input, shape index: {}]
  %s6 = inlined_call_operand.vmem [shape: f32[1,128], index: 6, kind: input, shape index: {}]
  %s7 = inlined_call_operand.hbm [shape: bf16[128,128], index: 7, kind: input, shape index: {}]
  %s8 = inlined_call_operand.vmem [shape: f32[128,128], index: 8, kind: output, shape index: {}]
  %s9 = sld [smem:[#allocation0]]
  $region54: #{nnlayer_forward_prepared.1} parent=0
    _
  %s11 = ssub.s32 1, %s9
  %s12 = scalar_select 0, %s11, %s9
  $region1: #{nnlayer_forward_prepared.1} parent=0
    #allocation2 [shape = 'u8[131072]{0}', space=vmem, size = 0x20000, scoped, tag = 'input window, operand 3, single buffered']
    #allocation3 [shape = 's32[1]{0}', space=sflag, size = 0x4, scoped, tag = 'scoped memory for nnlayer_forward_prepared.1']
    #allocation4 [shape = 'u8[131072]{0}', space=vmem, size = 0x20000, scoped, tag = 'input window, operand 5, single buffered']
    #allocation5 [shape = 's32[1]{0}', space=sflag, size = 0x4, scoped, tag = 'scoped memory for nnlayer_forward_prepared.1']
    #allocation6 [shape = 'u8[32768]{0}', space=vmem, size = 0x8000, scoped, tag = 'input window, operand 7, single buffered']
    %13 = vsyncpa [#allocation3], 0
    %14 = vsyncpa [#allocation5], 0
    // Predicated region
    $region2: #{nnlayer_forward_prepared.1} parent=1 // pred_check
      _
    $region3: #{nnlayer_forward_prepared.1} parent=1 // pred_check_branch
      %16 = sbr.rel (0) target = $region5
    $region4: #{nnlayer_forward_prepared.1} parent=1 // pred_region
      _
    $region5: #{nnlayer_forward_prepared.1} parent=1 // pred_fallthru
      _
    // Predicated region
    $region6: #{nnlayer_forward_prepared.1} parent=1 // pred_check
      _
    $region7: #{nnlayer_forward_prepared.1} parent=1 // pred_check_branch
      %18 = sbr.rel (0) target = $region9
    $region8: #{nnlayer_forward_prepared.1} parent=1 // pred_region
      _
    $region9: #{nnlayer_forward_prepared.1} parent=1 // pred_fallthru
      _
    // Predicated region
    $region10: #{nnlayer_forward_prepared.1} parent=1 // pred_check
      _
    $region11: #{nnlayer_forward_prepared.1} parent=1 // pred_check_branch
      %20 = sbr.rel (0) target = $region13
    $region12: #{nnlayer_forward_prepared.1} parent=1 // pred_region
      _
    $region13: #{nnlayer_forward_prepared.1} parent=1 // pred_fallthru
      _
    // Predicated region
    $region14: #{nnlayer_forward_prepared.1} parent=1 // pred_check
      _
    $region15: #{nnlayer_forward_prepared.1} parent=1 // pred_check_branch
      %22 = sbr.rel (0) target = $region17
    $region16: #{nnlayer_forward_prepared.1} parent=1 // pred_region
      %s24 = ssub.s32 4096, 4096
      %25 = vsyncadd [#allocation3], %s24
      %s26 = sshll.u32 [#allocation2], 4
      %s27 = int_to_ptr.vmem [resolvable:$true] %s26
      %32 = dma.hbm_to_vmem [thread:$0]  %s3, 4096, %s27, [#allocation3], 256, 256, 16
    $region17: #{nnlayer_forward_prepared.1} parent=1 // pred_fallthru
      _
    // Predicated region
    $region18: #{nnlayer_forward_prepared.1} parent=1 // pred_check
      _
    $region19: #{nnlayer_forward_prepared.1} parent=1 // pred_check_branch
      %34 = sbr.rel (0) target = $region21
    $region20: #{nnlayer_forward_prepared.1} parent=1 // pred_region
      _
    $region21: #{nnlayer_forward_prepared.1} parent=1 // pred_fallthru
      _
    // Predicated region
    $region22: #{nnlayer_forward_prepared.1} parent=1 // pred_check
      _
    $region23: #{nnlayer_forward_prepared.1} parent=1 // pred_check_branch
      %36 = sbr.rel (0) target = $region25
    $region24: #{nnlayer_forward_prepared.1} parent=1 // pred_region
      %s38 = ssub.s32 4096, 4096
      %39 = vsyncadd [#allocation5], %s38
      %s40 = sshll.u32 [#allocation4], 4
      %s41 = int_to_ptr.vmem [resolvable:$true] %s40
      %46 = dma.hbm_to_vmem [thread:$0]  %s5, 4096, %s41, [#allocation5], 64, 64, 4
    $region25: #{nnlayer_forward_prepared.1} parent=1 // pred_fallthru
      _
    // Predicated region
    $region26: #{nnlayer_forward_prepared.1} parent=1 // pred_check
      _
    $region27: #{nnlayer_forward_prepared.1} parent=1 // pred_check_branch
      %48 = sbr.rel (0) target = $region29
    $region28: #{nnlayer_forward_prepared.1} parent=1 // pred_region
      _
    $region29: #{nnlayer_forward_prepared.1} parent=1 // pred_fallthru
      _
    // Predicated region
    $region30: #{nnlayer_forward_prepared.1} parent=1 // pred_check
      _
    $region31: #{nnlayer_forward_prepared.1} parent=1 // pred_check_branch
      %50 = sbr.rel (0) target = $region33
    $region32: #{nnlayer_forward_prepared.1} parent=1 // pred_region
      %s52 = ssub.s32 1024, 1024
      %53 = vsyncadd [#allocation5], %s52
      %s54 = sshll.u32 [#allocation6], 4
      %s55 = int_to_ptr.vmem [resolvable:$true] %s54
      %60 = dma.hbm_to_vmem [thread:$0]  %s7, 1024, %s55, [#allocation5], 64, 64, 4
    $region33: #{nnlayer_forward_prepared.1} parent=1 // pred_fallthru
      _
    // Predicated region
    $region34: #{nnlayer_forward_prepared.1} parent=1 // pred_check
      _
    $region35: #{nnlayer_forward_prepared.1} parent=1 // pred_check_branch
      %62 = sbr.rel (0) target = $region37
    $region36: #{nnlayer_forward_prepared.1} parent=1 // pred_region
      %63 = dma.done [#allocation3], 4096
    $region37: #{nnlayer_forward_prepared.1} parent=1 // pred_fallthru
      _
    // Predicated region
    $region38: #{nnlayer_forward_prepared.1} parent=1 // pred_check
      _
    $region39: #{nnlayer_forward_prepared.1} parent=1 // pred_check_branch
      %65 = sbr.rel (0) target = $region41
    $region40: #{nnlayer_forward_prepared.1} parent=1 // pred_region
      %66 = dma.done [#allocation5], 4096
    $region41: #{nnlayer_forward_prepared.1} parent=1 // pred_fallthru
      _
    // Predicated region
    $region42: #{nnlayer_forward_prepared.1} parent=1 // pred_check
      _
    $region43: #{nnlayer_forward_prepared.1} parent=1 // pred_check_branch
      %68 = sbr.rel (0) target = $region45
    $region44: #{nnlayer_forward_prepared.1} parent=1 // pred_region
      %69 = dma.done [#allocation5], 1024
    $region45: #{nnlayer_forward_prepared.1} parent=1 // pred_fallthru
      _
    %v71 = vld [vmem:[%s0] sm:$0xf]
    %v72 = vld [vmem:[%s0 + $0x4] sm:$0xf]
    %v73 = vld [vmem:[%s0 + $0x8] sm:$0xf]
    %v74 = vld [vmem:[%s0 + $0xc] sm:$0xf]
    %v75 = vld [vmem:[%s0 + $0x10] sm:$0xf]
    %v76 = vld [vmem:[%s0 + $0x14] sm:$0xf]
    %v77 = vld [vmem:[%s0 + $0x18] sm:$0xf]
    %v78 = vld [vmem:[%s0 + $0x1c] sm:$0xf]
    %v79 = vld [vmem:[%s0 + $0x20] sm:$0xf]
    %v80 = vld [vmem:[%s0 + $0x24] sm:$0xf]
    %v81 = vld [vmem:[%s0 + $0x28] sm:$0xf]
    %v82 = vld [vmem:[%s0 + $0x2c] sm:$0xf]
    %v83 = vld [vmem:[%s0 + $0x30] sm:$0xf]
    %v84 = vld [vmem:[%s0 + $0x34] sm:$0xf]
    %v85 = vld [vmem:[%s0 + $0x38] sm:$0xf]
    %v86 = vld [vmem:[%s0 + $0x3c] sm:$0xf]
    %v87 = vld [vmem:[%s1] sm:$0xf]
    %v88 = vld [vmem:[%s1 + $0x4] sm:$0xf]
    %v89 = vld [vmem:[%s1 + $0x8] sm:$0xf]
    %v90 = vld [vmem:[%s1 + $0xc] sm:$0xf]
    %v91 = vld [vmem:[%s1 + $0x10] sm:$0xf]
    %v92 = vld [vmem:[%s1 + $0x14] sm:$0xf]
    %v93 = vld [vmem:[%s1 + $0x18] sm:$0xf]
    %v94 = vld [vmem:[%s1 + $0x1c] sm:$0xf]
    %v95 = vld [vmem:[%s1 + $0x20] sm:$0xf]
    %v96 = vld [vmem:[%s1 + $0x24] sm:$0xf]
    %v97 = vld [vmem:[%s1 + $0x28] sm:$0xf]
    %v98 = vld [vmem:[%s1 + $0x2c] sm:$0xf]
    %v99 = vld [vmem:[%s1 + $0x30] sm:$0xf]
    %v100 = vld [vmem:[%s1 + $0x34] sm:$0xf]
    %v101 = vld [vmem:[%s1 + $0x38] sm:$0xf]
    %v102 = vld [vmem:[%s1 + $0x3c] sm:$0xf]
    %v103 = vld [vmem:[%s2] sm:$0x1]
    %v105 = vlaneseq
    %v106 = vshrl.u32 %v105, 7
    %v107 = vsub.s32 0, %v106
    %v108 = vrot.slane %v103, %v107
    %v126 = vunpack.c.l.b16 %v71
    %v127 = vunpack.c.l.b16 %v72
    %v128 = vunpack.c.l.b16 %v73
    %v129 = vunpack.c.l.b16 %v74
    %v130 = vunpack.c.l.b16 %v75
    %v131 = vunpack.c.l.b16 %v76
    %v132 = vunpack.c.l.b16 %v77
    %v133 = vunpack.c.l.b16 %v78
    %v134 = vunpack.c.l.b16 %v79
    %v135 = vunpack.c.l.b16 %v80
    %v136 = vunpack.c.l.b16 %v81
    %v137 = vunpack.c.l.b16 %v82
    %v138 = vunpack.c.l.b16 %v83
    %v139 = vunpack.c.l.b16 %v84
    %v140 = vunpack.c.l.b16 %v85
    %v141 = vunpack.c.l.b16 %v86
    %v142 = vpack.c.b16 %v127, %v126
    %v143 = vpack.c.b16 %v129, %v128
    %v144 = vpack.c.b16 %v131, %v130
    %v145 = vpack.c.b16 %v133, %v132
    %v146 = vpack.c.b16 %v135, %v134
    %v147 = vpack.c.b16 %v137, %v136
    %v148 = vpack.c.b16 %v139, %v138
    %v149 = vpack.c.b16 %v141, %v140
    %v174 = vunpack.c.l.b16 %v87
    %v175 = vunpack.c.l.b16 %v88
    %v176 = vunpack.c.l.b16 %v89
    %v177 = vunpack.c.l.b16 %v90
    %v178 = vunpack.c.l.b16 %v91
    %v179 = vunpack.c.l.b16 %v92
    %v180 = vunpack.c.l.b16 %v93
    %v181 = vunpack.c.l.b16 %v94
    %v182 = vunpack.c.l.b16 %v95
    %v183 = vunpack.c.l.b16 %v96
    %v184 = vunpack.c.l.b16 %v97
    %v185 = vunpack.c.l.b16 %v98
    %v186 = vunpack.c.l.b16 %v99
    %v187 = vunpack.c.l.b16 %v100
    %v188 = vunpack.c.l.b16 %v101
    %v189 = vunpack.c.l.b16 %v102
    %v190 = vpack.c.b16 %v175, %v174
    %v191 = vpack.c.b16 %v177, %v176
    %v192 = vpack.c.b16 %v179, %v178
    %v193 = vpack.c.b16 %v181, %v180
    %v194 = vpack.c.b16 %v183, %v182
    %v195 = vpack.c.b16 %v185, %v184
    %v196 = vpack.c.b16 %v187, %v186
    %v197 = vpack.c.b16 %v189, %v188
    %206 = vmatprep.subr.bf16.mxu0 0
    %207 = vmatpush1.bf16.msra.mxu0 %v197
    %208 = vmatprep.subr.bf16.mxu0 0
    %209 = vmatpush1.bf16.msra.mxu0 %v196
    %210 = vmatprep.subr.bf16.mxu0 0
    %211 = vmatpush1.bf16.msra.mxu0 %v195
    %212 = vmatprep.subr.bf16.mxu0 0
    %213 = vmatpush1.bf16.msra.mxu0 %v194
    %214 = vmatprep.subr.bf16.mxu0 0
    %215 = vmatpush1.bf16.msra.mxu0 %v193
    %216 = vmatprep.subr.bf16.mxu0 0
    %217 = vmatpush1.bf16.msra.mxu0 %v192
    %218 = vmatprep.subr.bf16.mxu0 0
    %219 = vmatpush1.bf16.msra.mxu0 %v191
    %220 = vmatprep.subr.bf16.mxu0 0
    %221 = vmatpush1.bf16.msra.mxu0 %v190
    %222 = vmatprep.subr.bf16.mxu0 0
    %223 = vmatpush2.bf16.msra.mxu0 0
    %224 = vmatprep.subr.bf16.mxu0 0
    %225 = vmatpush2.bf16.msra.mxu0 0
    %226 = vmatprep.subr.bf16.mxu0 0
    %227 = vmatpush2.bf16.msra.mxu0 0
    %228 = vmatprep.subr.bf16.mxu0 0
    %229 = vmatpush2.bf16.msra.mxu0 0
    %230 = vmatprep.subr.bf16.mxu0 0
    %231 = vmatpush2.bf16.msra.mxu0 0
    %232 = vmatprep.subr.bf16.mxu0 0
    %233 = vmatpush2.bf16.msra.mxu0 0
    %234 = vmatprep.subr.bf16.mxu0 0
    %235 = vmatpush2.bf16.msra.mxu0 0
    %236 = vmatprep.subr.bf16.mxu0 0
    %237 = vmatpush2.bf16.msra.mxu0 0
    %238 = vmatprep.mubr.bf16.mxu0 0
    %239 = vmatmul.mubr.bf16.gmra.mxu0 %v142
    %v240 = vpop.f32.mrf.mxu0
    %v241 = vadd.f32 %v108, %v240
    %v242 = vpop.f32.mrf.mxu0
    %v243 = vpop.f32.mrf.mxu0
    %v244 = vadd.f32 %v108, %v243
    %v245 = vpop.f32.mrf.mxu0
    %246 = vmatprep.mubr.bf16.mxu0 0
    %247 = vmatmul.mubr.bf16.gmra.mxu0 %v143
    %v248 = vpop.f32.mrf.mxu0
    %v249 = vadd.f32 %v108, %v248
    %v250 = vpop.f32.mrf.mxu0
    %v251 = vpop.f32.mrf.mxu0
    %v252 = vadd.f32 %v108, %v251
    %v253 = vpop.f32.mrf.mxu0
    %254 = vmatprep.mubr.bf16.mxu0 0
    %255 = vmatmul.mubr.bf16.gmra.mxu0 %v144
    %v256 = vpop.f32.mrf.mxu0
    %v257 = vadd.f32 %v108, %v256
    %v258 = vpop.f32.mrf.mxu0
    %v259 = vpop.f32.mrf.mxu0
    %v260 = vadd.f32 %v108, %v259
    %v261 = vpop.f32.mrf.mxu0
    %262 = vmatprep.mubr.bf16.mxu0 0
    %263 = vmatmul.mubr.bf16.gmra.mxu0 %v145
    %v264 = vpop.f32.mrf.mxu0
    %v265 = vadd.f32 %v108, %v264
    %v266 = vpop.f32.mrf.mxu0
    %v267 = vpop.f32.mrf.mxu0
    %v268 = vadd.f32 %v108, %v267
    %v269 = vpop.f32.mrf.mxu0
    %270 = vmatprep.mubr.bf16.mxu0 0
    %271 = vmatmul.mubr.bf16.gmra.mxu0 %v146
    %v272 = vpop.f32.mrf.mxu0
    %v273 = vadd.f32 %v108, %v272
    %v274 = vpop.f32.mrf.mxu0
    %v275 = vpop.f32.mrf.mxu0
    %v276 = vadd.f32 %v108, %v275
    %v277 = vpop.f32.mrf.mxu0
    %278 = vmatprep.mubr.bf16.mxu0 0
    %279 = vmatmul.mubr.bf16.gmra.mxu0 %v147
    %v280 = vpop.f32.mrf.mxu0
    %v281 = vadd.f32 %v108, %v280
    %v282 = vpop.f32.mrf.mxu0
    %v283 = vpop.f32.mrf.mxu0
    %v284 = vadd.f32 %v108, %v283
    %v285 = vpop.f32.mrf.mxu0
    %286 = vmatprep.mubr.bf16.mxu0 0
    %287 = vmatmul.mubr.bf16.gmra.mxu0 %v148
    %v288 = vpop.f32.mrf.mxu0
    %v289 = vadd.f32 %v108, %v288
    %v290 = vpop.f32.mrf.mxu0
    %v291 = vpop.f32.mrf.mxu0
    %v292 = vadd.f32 %v108, %v291
    %v293 = vpop.f32.mrf.mxu0
    %294 = vmatprep.mubr.bf16.mxu0 0
    %295 = vmatmul.mubr.bf16.gmra.mxu0 %v149
    %v296 = vpop.f32.mrf.mxu0
    %v297 = vadd.f32 %v108, %v296
    %v298 = vpop.f32.mrf.mxu0
    %v299 = vpop.f32.mrf.mxu0
    %v300 = vadd.f32 %v108, %v299
    %v301 = vpop.f32.mrf.mxu0
    %302 = vdwg.mxu0
    %v303 = vmax.f32 %v241, 0.0
    %v304 = vmax.f32 %v244, 0.0
    %v305 = vmax.f32 %v249, 0.0
    %v306 = vmax.f32 %v252, 0.0
    %v307 = vmax.f32 %v257, 0.0
    %v308 = vmax.f32 %v260, 0.0
    %v309 = vmax.f32 %v265, 0.0
    %v310 = vmax.f32 %v268, 0.0
    %v311 = vmax.f32 %v273, 0.0
    %v312 = vmax.f32 %v276, 0.0
    %v313 = vmax.f32 %v281, 0.0
    %v314 = vmax.f32 %v284, 0.0
    %v315 = vmax.f32 %v289, 0.0
    %v316 = vmax.f32 %v292, 0.0
    %v317 = vmax.f32 %v297, 0.0
    %v318 = vmax.f32 %v300, 0.0
    %v319 = vpack.c.bf16 %v304, %v303
    %v320 = vpack.c.bf16 %v306, %v305
    %v321 = vpack.c.bf16 %v308, %v307
    %v322 = vpack.c.bf16 %v310, %v309
    %v323 = vpack.c.bf16 %v312, %v311
    %v324 = vpack.c.bf16 %v314, %v313
    %v325 = vpack.c.bf16 %v316, %v315
    %v326 = vpack.c.bf16 %v318, %v317
    %v327 = vld [vmem:[#allocation2] sm:$0xff]
    %v328 = vld [vmem:[#allocation2 + $0x8] sm:$0xff]
    %v329 = vld [vmem:[#allocation2 + $0x10] sm:$0xff]
    %v330 = vld [vmem:[#allocation2 + $0x18] sm:$0xff]
    %v331 = vld [vmem:[#allocation2 + $0x20] sm:$0xff]
    %v332 = vld [vmem:[#allocation2 + $0x28] sm:$0xff]
    %v333 = vld [vmem:[#allocation2 + $0x30] sm:$0xff]
    %v334 = vld [vmem:[#allocation2 + $0x38] sm:$0xff]
    %v335 = vld [vmem:[#allocation2 + $0x40] sm:$0xff]
    %v336 = vld [vmem:[#allocation2 + $0x48] sm:$0xff]
    %v337 = vld [vmem:[#allocation2 + $0x50] sm:$0xff]
    %v338 = vld [vmem:[#allocation2 + $0x58] sm:$0xff]
    %v339 = vld [vmem:[#allocation2 + $0x60] sm:$0xff]
    %v340 = vld [vmem:[#allocation2 + $0x68] sm:$0xff]
    %v341 = vld [vmem:[#allocation2 + $0x70] sm:$0xff]
    %v342 = vld [vmem:[#allocation2 + $0x78] sm:$0xff]
    %v343 = vld [vmem:[#allocation2 + $0x80] sm:$0xff]
    %v344 = vld [vmem:[#allocation2 + $0x88] sm:$0xff]
    %v345 = vld [vmem:[#allocation2 + $0x90] sm:$0xff]
    %v346 = vld [vmem:[#allocation2 + $0x98] sm:$0xff]
    %v347 = vld [vmem:[#allocation2 + $0xa0] sm:$0xff]
    %v348 = vld [vmem:[#allocation2 + $0xa8] sm:$0xff]
    %v349 = vld [vmem:[#allocation2 + $0xb0] sm:$0xff]
    %v350 = vld [vmem:[#allocation2 + $0xb8] sm:$0xff]
    %v351 = vld [vmem:[#allocation2 + $0xc0] sm:$0xff]
    %v352 = vld [vmem:[#allocation2 + $0xc8] sm:$0xff]
    %v353 = vld [vmem:[#allocation2 + $0xd0] sm:$0xff]
    %v354 = vld [vmem:[#allocation2 + $0xd8] sm:$0xff]
    %v355 = vld [vmem:[#allocation2 + $0xe0] sm:$0xff]
    %v356 = vld [vmem:[#allocation2 + $0xe8] sm:$0xff]
    %v357 = vld [vmem:[#allocation2 + $0xf0] sm:$0xff]
    %v358 = vld [vmem:[#allocation2 + $0xf8] sm:$0xff]
    %v359 = vld [vmem:[%s4] sm:$0xf]
    %v361 = vlaneseq
    %v362 = vshrl.u32 %v361, 7
    %v363 = vsub.s32 0, %v362
    %v364 = vrot.slane %v359, %v363
    %v365 = vlaneseq
    %v366 = vshrl.u32 %v365, 7
    %v367 = vsub.s32 1, %v366
    %v368 = vrot.slane %v359, %v367
    %v369 = vlaneseq
    %v370 = vshrl.u32 %v369, 7
    %v371 = vsub.s32 2, %v370
    %v372 = vrot.slane %v359, %v371
    %v373 = vlaneseq
    %v374 = vshrl.u32 %v373, 7
    %v375 = vsub.s32 3, %v374
    %v376 = vrot.slane %v359, %v375
    %v413 = vunpack.c.l.b16 %v327
    %v414 = vunpack.c.h.b16 %v327
    %v415 = vunpack.c.l.b16 %v328
    %v416 = vunpack.c.h.b16 %v328
    %v417 = vunpack.c.l.b16 %v329
    %v418 = vunpack.c.h.b16 %v329
    %v419 = vunpack.c.l.b16 %v330
    %v420 = vunpack.c.h.b16 %v330
    %v421 = vunpack.c.l.b16 %v331
    %v422 = vunpack.c.h.b16 %v331
    %v423 = vunpack.c.l.b16 %v332
    %v424 = vunpack.c.h.b16 %v332
    %v425 = vunpack.c.l.b16 %v333
    %v426 = vunpack.c.h.b16 %v333
    %v427 = vunpack.c.l.b16 %v334
    %v428 = vunpack.c.h.b16 %v334
    %v429 = vunpack.c.l.b16 %v335
    %v430 = vunpack.c.h.b16 %v335
    %v431 = vunpack.c.l.b16 %v336
    %v432 = vunpack.c.h.b16 %v336
    %v433 = vunpack.c.l.b16 %v337
    %v434 = vunpack.c.h.b16 %v337
    %v435 = vunpack.c.l.b16 %v338
    %v436 = vunpack.c.h.b16 %v338
    %v437 = vunpack.c.l.b16 %v339
    %v438 = vunpack.c.h.b16 %v339
    %v439 = vunpack.c.l.b16 %v340
    %v440 = vunpack.c.h.b16 %v340
    %v441 = vunpack.c.l.b16 %v341
    %v442 = vunpack.c.h.b16 %v341
    %v443 = vunpack.c.l.b16 %v342
    %v444 = vunpack.c.h.b16 %v342
    %v445 = vunpack.c.l.b16 %v343
    %v446 = vunpack.c.h.b16 %v343
    %v447 = vunpack.c.l.b16 %v344
    %v448 = vunpack.c.h.b16 %v344
    %v449 = vunpack.c.l.b16 %v345
    %v450 = vunpack.c.h.b16 %v345
    %v451 = vunpack.c.l.b16 %v346
    %v452 = vunpack.c.h.b16 %v346
    %v453 = vunpack.c.l.b16 %v347
    %v454 = vunpack.c.h.b16 %v347
    %v455 = vunpack.c.l.b16 %v348
    %v456 = vunpack.c.h.b16 %v348
    %v457 = vunpack.c.l.b16 %v349
    %v458 = vunpack.c.h.b16 %v349
    %v459 = vunpack.c.l.b16 %v350
    %v460 = vunpack.c.h.b16 %v350
    %v461 = vunpack.c.l.b16 %v351
    %v462 = vunpack.c.h.b16 %v351
    %v463 = vunpack.c.l.b16 %v352
    %v464 = vunpack.c.h.b16 %v352
    %v465 = vunpack.c.l.b16 %v353
    %v466 = vunpack.c.h.b16 %v353
    %v467 = vunpack.c.l.b16 %v354
    %v468 = vunpack.c.h.b16 %v354
    %v469 = vunpack.c.l.b16 %v355
    %v470 = vunpack.c.h.b16 %v355
    %v471 = vunpack.c.l.b16 %v356
    %v472 = vunpack.c.h.b16 %v356
    %v473 = vunpack.c.l.b16 %v357
    %v474 = vunpack.c.h.b16 %v357
    %v475 = vunpack.c.l.b16 %v358
    %v476 = vunpack.c.h.b16 %v358
    %v477 = vpack.c.b16 %v417, %v413
    %v478 = vpack.c.b16 %v418, %v414
    %v479 = vpack.c.b16 %v419, %v415
    %v480 = vpack.c.b16 %v420, %v416
    %v481 = vpack.c.b16 %v425, %v421
    %v482 = vpack.c.b16 %v426, %v422
    %v483 = vpack.c.b16 %v427, %v423
    %v484 = vpack.c.b16 %v428, %v424
    %v485 = vpack.c.b16 %v433, %v429
    %v486 = vpack.c.b16 %v434, %v430
    %v487 = vpack.c.b16 %v435, %v431
    %v488 = vpack.c.b16 %v436, %v432
    %v489 = vpack.c.b16 %v441, %v437
    %v490 = vpack.c.b16 %v442, %v438
    %v491 = vpack.c.b16 %v443, %v439
    %v492 = vpack.c.b16 %v444, %v440
    %v493 = vpack.c.b16 %v449, %v445
    %v494 = vpack.c.b16 %v450, %v446
    %v495 = vpack.c.b16 %v451, %v447
    %v496 = vpack.c.b16 %v452, %v448
    %v497 = vpack.c.b16 %v457, %v453
    %v498 = vpack.c.b16 %v458, %v454
    %v499 = vpack.c.b16 %v459, %v455
    %v500 = vpack.c.b16 %v460, %v456
    %v501 = vpack.c.b16 %v465, %v461
    %v502 = vpack.c.b16 %v466, %v462
    %v503 = vpack.c.b16 %v467, %v463
    %v504 = vpack.c.b16 %v468, %v464
    %v505 = vpack.c.b16 %v473, %v469
    %v506 = vpack.c.b16 %v474, %v470
    %v507 = vpack.c.b16 %v475, %v471
    %v508 = vpack.c.b16 %v476, %v472
    %541 = vmatprep.subr.bf16.mxu0 %v506
    %542 = vmatpush1.bf16.msra.mxu0 %v505
    %543 = vmatprep.subr.bf16.mxu0 %v502
    %544 = vmatpush1.bf16.msra.mxu0 %v501
    %545 = vmatprep.subr.bf16.mxu0 %v498
    %546 = vmatpush1.bf16.msra.mxu0 %v497
    %547 = vmatprep.subr.bf16.mxu0 %v494
    %548 = vmatpush1.bf16.msra.mxu0 %v493
    %549 = vmatprep.subr.bf16.mxu0 %v490
    %550 = vmatpush1.bf16.msra.mxu0 %v489
    %551 = vmatprep.subr.bf16.mxu0 %v486
    %552 = vmatpush1.bf16.msra.mxu0 %v485
    %553 = vmatprep.subr.bf16.mxu0 %v482
    %554 = vmatpush1.bf16.msra.mxu0 %v481
    %555 = vmatprep.subr.bf16.mxu0 %v478
    %556 = vmatpush1.bf16.msra.mxu0 %v477
    %557 = vmatprep.subr.bf16.mxu0 0
    %558 = vmatpush2.bf16.msra.mxu0 0
    %559 = vmatprep.subr.bf16.mxu0 0
    %560 = vmatpush2.bf16.msra.mxu0 0
    %561 = vmatprep.subr.bf16.mxu0 0
    %562 = vmatpush2.bf16.msra.mxu0 0
    %563 = vmatprep.subr.bf16.mxu0 0
    %564 = vmatpush2.bf16.msra.mxu0 0
    %565 = vmatprep.subr.bf16.mxu0 0
    %566 = vmatpush2.bf16.msra.mxu0 0
    %567 = vmatprep.subr.bf16.mxu0 0
    %568 = vmatpush2.bf16.msra.mxu0 0
    %569 = vmatprep.subr.bf16.mxu0 0
    %570 = vmatpush2.bf16.msra.mxu0 0
    %571 = vmatprep.subr.bf16.mxu0 0
    %572 = vmatpush2.bf16.msra.mxu0 0
    %573 = vmatprep.mubr.bf16.mxu0 0
    %574 = vmatmul.mubr.bf16.gmra.mxu0 %v319
    %v575 = vpop.f32.mrf.mxu0
    %v576 = vadd.f32 %v364, %v575
    %v577 = vpop.f32.mrf.mxu0
    %v578 = vadd.f32 %v368, %v577
    %v579 = vpop.f32.mrf.mxu0
    %v580 = vadd.f32 %v364, %v579
    %v581 = vpop.f32.mrf.mxu0
    %v582 = vadd.f32 %v368, %v581
    %583 = vmatprep.mubr.bf16.mxu0 0
    %584 = vmatmul.mubr.bf16.gmra.mxu0 %v320
    %v585 = vpop.f32.mrf.mxu0
    %v586 = vadd.f32 %v364, %v585
    %v587 = vpop.f32.mrf.mxu0
    %v588 = vadd.f32 %v368, %v587
    %v589 = vpop.f32.mrf.mxu0
    %v590 = vadd.f32 %v364, %v589
    %v591 = vpop.f32.mrf.mxu0
    %v592 = vadd.f32 %v368, %v591
    %593 = vmatprep.mubr.bf16.mxu0 0
    %594 = vmatmul.mubr.bf16.gmra.mxu0 %v321
    %v595 = vpop.f32.mrf.mxu0
    %v596 = vadd.f32 %v364, %v595
    %v597 = vpop.f32.mrf.mxu0
    %v598 = vadd.f32 %v368, %v597
    %v599 = vpop.f32.mrf.mxu0
    %v600 = vadd.f32 %v364, %v599
    %v601 = vpop.f32.mrf.mxu0
    %v602 = vadd.f32 %v368, %v601
    %603 = vmatprep.mubr.bf16.mxu0 0
    %604 = vmatmul.mubr.bf16.gmra.mxu0 %v322
    %v605 = vpop.f32.mrf.mxu0
    %v606 = vadd.f32 %v364, %v605
    %v607 = vpop.f32.mrf.mxu0
    %v608 = vadd.f32 %v368, %v607
    %v609 = vpop.f32.mrf.mxu0
    %v610 = vadd.f32 %v364, %v609
    %v611 = vpop.f32.mrf.mxu0
    %v612 = vadd.f32 %v368, %v611
    %613 = vmatprep.mubr.bf16.mxu0 0
    %614 = vmatmul.mubr.bf16.gmra.mxu0 %v323
    %v615 = vpop.f32.mrf.mxu0
    %v616 = vadd.f32 %v364, %v615
    %v617 = vpop.f32.mrf.mxu0
    %v618 = vadd.f32 %v368, %v617
    %v619 = vpop.f32.mrf.mxu0
    %v620 = vadd.f32 %v364, %v619
    %v621 = vpop.f32.mrf.mxu0
    %v622 = vadd.f32 %v368, %v621
    %623 = vmatprep.mubr.bf16.mxu0 0
    %624 = vmatmul.mubr.bf16.gmra.mxu0 %v324
    %v625 = vpop.f32.mrf.mxu0
    %v626 = vadd.f32 %v364, %v625
    %v627 = vpop.f32.mrf.mxu0
    %v628 = vadd.f32 %v368, %v627
    %v629 = vpop.f32.mrf.mxu0
    %v630 = vadd.f32 %v364, %v629
    %v631 = vpop.f32.mrf.mxu0
    %v632 = vadd.f32 %v368, %v631
    %633 = vmatprep.mubr.bf16.mxu0 0
    %634 = vmatmul.mubr.bf16.gmra.mxu0 %v325
    %v635 = vpop.f32.mrf.mxu0
    %v636 = vadd.f32 %v364, %v635
    %v637 = vpop.f32.mrf.mxu0
    %v638 = vadd.f32 %v368, %v637
    %v639 = vpop.f32.mrf.mxu0
    %v640 = vadd.f32 %v364, %v639
    %v641 = vpop.f32.mrf.mxu0
    %v642 = vadd.f32 %v368, %v641
    %643 = vmatprep.mubr.bf16.mxu0 0
    %644 = vmatmul.mubr.bf16.gmra.mxu0 %v326
    %v645 = vpop.f32.mrf.mxu0
    %v646 = vadd.f32 %v364, %v645
    %v647 = vpop.f32.mrf.mxu0
    %v648 = vadd.f32 %v368, %v647
    %v649 = vpop.f32.mrf.mxu0
    %v650 = vadd.f32 %v364, %v649
    %v651 = vpop.f32.mrf.mxu0
    %v652 = vadd.f32 %v368, %v651
    %653 = vdwg.mxu0
    %654 = vmatprep.subr.bf16.mxu0 %v508
    %655 = vmatpush1.bf16.msra.mxu0 %v507
    %656 = vmatprep.subr.bf16.mxu0 %v504
    %657 = vmatpush1.bf16.msra.mxu0 %v503
    %658 = vmatprep.subr.bf16.mxu0 %v500
    %659 = vmatpush1.bf16.msra.mxu0 %v499
    %660 = vmatprep.subr.bf16.mxu0 %v496
    %661 = vmatpush1.bf16.msra.mxu0 %v495
    %662 = vmatprep.subr.bf16.mxu0 %v492
    %663 = vmatpush1.bf16.msra.mxu0 %v491
    %664 = vmatprep.subr.bf16.mxu0 %v488
    %665 = vmatpush1.bf16.msra.mxu0 %v487
    %666 = vmatprep.subr.bf16.mxu0 %v484
    %667 = vmatpush1.bf16.msra.mxu0 %v483
    %668 = vmatprep.subr.bf16.mxu0 %v480
    %669 = vmatpush1.bf16.msra.mxu0 %v479
    %670 = vmatprep.subr.bf16.mxu0 0
    %671 = vmatpush2.bf16.msra.mxu0 0
    %672 = vmatprep.subr.bf16.mxu0 0
    %673 = vmatpush2.bf16.msra.mxu0 0
    %674 = vmatprep.subr.bf16.mxu0 0
    %675 = vmatpush2.bf16.msra.mxu0 0
    %676 = vmatprep.subr.bf16.mxu0 0
    %677 = vmatpush2.bf16.msra.mxu0 0
    %678 = vmatprep.subr.bf16.mxu0 0
    %679 = vmatpush2.bf16.msra.mxu0 0
    %680 = vmatprep.subr.bf16.mxu0 0
    %681 = vmatpush2.bf16.msra.mxu0 0
    %682 = vmatprep.subr.bf16.mxu0 0
    %683 = vmatpush2.bf16.msra.mxu0 0
    %684 = vmatprep.subr.bf16.mxu0 0
    %685 = vmatpush2.bf16.msra.mxu0 0
    %686 = vmatprep.mubr.bf16.mxu0 0
    %687 = vmatmul.mubr.bf16.gmra.mxu0 %v319
    %v688 = vpop.f32.mrf.mxu0
    %v689 = vadd.f32 %v372, %v688
    %v690 = vpop.f32.mrf.mxu0
    %v691 = vadd.f32 %v376, %v690
    %v692 = vpop.f32.mrf.mxu0
    %v693 = vadd.f32 %v372, %v692
    %v694 = vpop.f32.mrf.mxu0
    %v695 = vadd.f32 %v376, %v694
    %696 = vmatprep.mubr.bf16.mxu0 0
    %697 = vmatmul.mubr.bf16.gmra.mxu0 %v320
    %v698 = vpop.f32.mrf.mxu0
    %v699 = vadd.f32 %v372, %v698
    %v700 = vpop.f32.mrf.mxu0
    %v701 = vadd.f32 %v376, %v700
    %v702 = vpop.f32.mrf.mxu0
    %v703 = vadd.f32 %v372, %v702
    %v704 = vpop.f32.mrf.mxu0
    %v705 = vadd.f32 %v376, %v704
    %706 = vmatprep.mubr.bf16.mxu0 0
    %707 = vmatmul.mubr.bf16.gmra.mxu0 %v321
    %v708 = vpop.f32.mrf.mxu0
    %v709 = vadd.f32 %v372, %v708
    %v710 = vpop.f32.mrf.mxu0
    %v711 = vadd.f32 %v376, %v710
    %v712 = vpop.f32.mrf.mxu0
    %v713 = vadd.f32 %v372, %v712
    %v714 = vpop.f32.mrf.mxu0
    %v715 = vadd.f32 %v376, %v714
    %716 = vmatprep.mubr.bf16.mxu0 0
    %717 = vmatmul.mubr.bf16.gmra.mxu0 %v322
    %v718 = vpop.f32.mrf.mxu0
    %v719 = vadd.f32 %v372, %v718
    %v720 = vpop.f32.mrf.mxu0
    %v721 = vadd.f32 %v376, %v720
    %v722 = vpop.f32.mrf.mxu0
    %v723 = vadd.f32 %v372, %v722
    %v724 = vpop.f32.mrf.mxu0
    %v725 = vadd.f32 %v376, %v724
    %726 = vmatprep.mubr.bf16.mxu0 0
    %727 = vmatmul.mubr.bf16.gmra.mxu0 %v323
    %v728 = vpop.f32.mrf.mxu0
    %v729 = vadd.f32 %v372, %v728
    %v730 = vpop.f32.mrf.mxu0
    %v731 = vadd.f32 %v376, %v730
    %v732 = vpop.f32.mrf.mxu0
    %v733 = vadd.f32 %v372, %v732
    %v734 = vpop.f32.mrf.mxu0
    %v735 = vadd.f32 %v376, %v734
    %736 = vmatprep.mubr.bf16.mxu0 0
    %737 = vmatmul.mubr.bf16.gmra.mxu0 %v324
    %v738 = vpop.f32.mrf.mxu0
    %v739 = vadd.f32 %v372, %v738
    %v740 = vpop.f32.mrf.mxu0
    %v741 = vadd.f32 %v376, %v740
    %v742 = vpop.f32.mrf.mxu0
    %v743 = vadd.f32 %v372, %v742
    %v744 = vpop.f32.mrf.mxu0
    %v745 = vadd.f32 %v376, %v744
    %746 = vmatprep.mubr.bf16.mxu0 0
    %747 = vmatmul.mubr.bf16.gmra.mxu0 %v325
    %v748 = vpop.f32.mrf.mxu0
    %v749 = vadd.f32 %v372, %v748
    %v750 = vpop.f32.mrf.mxu0
    %v751 = vadd.f32 %v376, %v750
    %v752 = vpop.f32.mrf.mxu0
    %v753 = vadd.f32 %v372, %v752
    %v754 = vpop.f32.mrf.mxu0
    %v755 = vadd.f32 %v376, %v754
    %756 = vmatprep.mubr.bf16.mxu0 0
    %757 = vmatmul.mubr.bf16.gmra.mxu0 %v326
    %v758 = vpop.f32.mrf.mxu0
    %v759 = vadd.f32 %v372, %v758
    %v760 = vpop.f32.mrf.mxu0
    %v761 = vadd.f32 %v376, %v760
    %v762 = vpop.f32.mrf.mxu0
    %v763 = vadd.f32 %v372, %v762
    %v764 = vpop.f32.mrf.mxu0
    %v765 = vadd.f32 %v376, %v764
    %766 = vdwg.mxu0
    %v767 = vmax.f32 %v576, 0.0
    %v768 = vmax.f32 %v578, 0.0
    %v769 = vmax.f32 %v689, 0.0
    %v770 = vmax.f32 %v691, 0.0
    %v771 = vmax.f32 %v580, 0.0
    %v772 = vmax.f32 %v582, 0.0
    %v773 = vmax.f32 %v693, 0.0
    %v774 = vmax.f32 %v695, 0.0
    %v775 = vmax.f32 %v586, 0.0
    %v776 = vmax.f32 %v588, 0.0
    %v777 = vmax.f32 %v699, 0.0
    %v778 = vmax.f32 %v701, 0.0
    %v779 = vmax.f32 %v590, 0.0
    %v780 = vmax.f32 %v592, 0.0
    %v781 = vmax.f32 %v703, 0.0
    %v782 = vmax.f32 %v705, 0.0
    %v783 = vmax.f32 %v596, 0.0
    %v784 = vmax.f32 %v598, 0.0
    %v785 = vmax.f32 %v709, 0.0
    %v786 = vmax.f32 %v711, 0.0
    %v787 = vmax.f32 %v600, 0.0
    %v788 = vmax.f32 %v602, 0.0
    %v789 = vmax.f32 %v713, 0.0
    %v790 = vmax.f32 %v715, 0.0
    %v791 = vmax.f32 %v606, 0.0
    %v792 = vmax.f32 %v608, 0.0
    %v793 = vmax.f32 %v719, 0.0
    %v794 = vmax.f32 %v721, 0.0
    %v795 = vmax.f32 %v610, 0.0
    %v796 = vmax.f32 %v612, 0.0
    %v797 = vmax.f32 %v723, 0.0
    %v798 = vmax.f32 %v725, 0.0
    %v799 = vmax.f32 %v616, 0.0
    %v800 = vmax.f32 %v618, 0.0
    %v801 = vmax.f32 %v729, 0.0
    %v802 = vmax.f32 %v731, 0.0
    %v803 = vmax.f32 %v620, 0.0
    %v804 = vmax.f32 %v622, 0.0
    %v805 = vmax.f32 %v733, 0.0
    %v806 = vmax.f32 %v735, 0.0
    %v807 = vmax.f32 %v626, 0.0
    %v808 = vmax.f32 %v628, 0.0
    %v809 = vmax.f32 %v739, 0.0
    %v810 = vmax.f32 %v741, 0.0
    %v811 = vmax.f32 %v630, 0.0
    %v812 = vmax.f32 %v632, 0.0
    %v813 = vmax.f32 %v743, 0.0
    %v814 = vmax.f32 %v745, 0.0
    %v815 = vmax.f32 %v636, 0.0
    %v816 = vmax.f32 %v638, 0.0
    %v817 = vmax.f32 %v749, 0.0
    %v818 = vmax.f32 %v751, 0.0
    %v819 = vmax.f32 %v640, 0.0
    %v820 = vmax.f32 %v642, 0.0
    %v821 = vmax.f32 %v753, 0.0
    %v822 = vmax.f32 %v755, 0.0
    %v823 = vmax.f32 %v646, 0.0
    %v824 = vmax.f32 %v648, 0.0
    %v825 = vmax.f32 %v759, 0.0
    %v826 = vmax.f32 %v761, 0.0
    %v827 = vmax.f32 %v650, 0.0
    %v828 = vmax.f32 %v652, 0.0
    %v829 = vmax.f32 %v763, 0.0
    %v830 = vmax.f32 %v765, 0.0
    %v831 = vpack.c.bf16 %v771, %v767
    %v832 = vpack.c.bf16 %v772, %v768
    %v833 = vpack.c.bf16 %v773, %v769
    %v834 = vpack.c.bf16 %v774, %v770
    %v835 = vpack.c.bf16 %v779, %v775
    %v836 = vpack.c.bf16 %v780, %v776
    %v837 = vpack.c.bf16 %v781, %v777
    %v838 = vpack.c.bf16 %v782, %v778
    %v839 = vpack.c.bf16 %v787, %v783
    %v840 = vpack.c.bf16 %v788, %v784
    %v841 = vpack.c.bf16 %v789, %v785
    %v842 = vpack.c.bf16 %v790, %v786
    %v843 = vpack.c.bf16 %v795, %v791
    %v844 = vpack.c.bf16 %v796, %v792
    %v845 = vpack.c.bf16 %v797, %v793
    %v846 = vpack.c.bf16 %v798, %v794
    %v847 = vpack.c.bf16 %v803, %v799
    %v848 = vpack.c.bf16 %v804, %v800
    %v849 = vpack.c.bf16 %v805, %v801
    %v850 = vpack.c.bf16 %v806, %v802
    %v851 = vpack.c.bf16 %v811, %v807
    %v852 = vpack.c.bf16 %v812, %v808
    %v853 = vpack.c.bf16 %v813, %v809
    %v854 = vpack.c.bf16 %v814, %v810
    %v855 = vpack.c.bf16 %v819, %v815
    %v856 = vpack.c.bf16 %v820, %v816
    %v857 = vpack.c.bf16 %v821, %v817
    %v858 = vpack.c.bf16 %v822, %v818
    %v859 = vpack.c.bf16 %v827, %v823
    %v860 = vpack.c.bf16 %v828, %v824
    %v861 = vpack.c.bf16 %v829, %v825
    %v862 = vpack.c.bf16 %v830, %v826
    %v863 = vld [vmem:[#allocation4] sm:$0xf]
    %v864 = vld [vmem:[#allocation4 + $0x4] sm:$0xf]
    %v865 = vld [vmem:[#allocation4 + $0x8] sm:$0xf]
    %v866 = vld [vmem:[#allocation4 + $0xc] sm:$0xf]
    %v867 = vld [vmem:[#allocation4 + $0x10] sm:$0xf]
    %v868 = vld [vmem:[#allocation4 + $0x14] sm:$0xf]
    %v869 = vld [vmem:[#allocation4 + $0x18] sm:$0xf]
    %v870 = vld [vmem:[#allocation4 + $0x1c] sm:$0xf]
    %v871 = vld [vmem:[#allocation4 + $0x20] sm:$0xf]
    %v872 = vld [vmem:[#allocation4 + $0x24] sm:$0xf]
    %v873 = vld [vmem:[#allocation4 + $0x28] sm:$0xf]
    %v874 = vld [vmem:[#allocation4 + $0x2c] sm:$0xf]
    %v875 = vld [vmem:[#allocation4 + $0x30] sm:$0xf]
    %v876 = vld [vmem:[#allocation4 + $0x34] sm:$0xf]
    %v877 = vld [vmem:[#allocation4 + $0x38] sm:$0xf]
    %v878 = vld [vmem:[#allocation4 + $0x3c] sm:$0xf]
    %v879 = vld [vmem:[#allocation4 + $0x40] sm:$0xf]
    %v880 = vld [vmem:[#allocation4 + $0x44] sm:$0xf]
    %v881 = vld [vmem:[#allocation4 + $0x48] sm:$0xf]
    %v882 = vld [vmem:[#allocation4 + $0x4c] sm:$0xf]
    %v883 = vld [vmem:[#allocation4 + $0x50] sm:$0xf]
    %v884 = vld [vmem:[#allocation4 + $0x54] sm:$0xf]
    %v885 = vld [vmem:[#allocation4 + $0x58] sm:$0xf]
    %v886 = vld [vmem:[#allocation4 + $0x5c] sm:$0xf]
    %v887 = vld [vmem:[#allocation4 + $0x60] sm:$0xf]
    %v888 = vld [vmem:[#allocation4 + $0x64] sm:$0xf]
    %v889 = vld [vmem:[#allocation4 + $0x68] sm:$0xf]
    %v890 = vld [vmem:[#allocation4 + $0x6c] sm:$0xf]
    %v891 = vld [vmem:[#allocation4 + $0x70] sm:$0xf]
    %v892 = vld [vmem:[#allocation4 + $0x74] sm:$0xf]
    %v893 = vld [vmem:[#allocation4 + $0x78] sm:$0xf]
    %v894 = vld [vmem:[#allocation4 + $0x7c] sm:$0xf]
    %v895 = vld [vmem:[#allocation4 + $0x80] sm:$0xf]
    %v896 = vld [vmem:[#allocation4 + $0x84] sm:$0xf]
    %v897 = vld [vmem:[#allocation4 + $0x88] sm:$0xf]
    %v898 = vld [vmem:[#allocation4 + $0x8c] sm:$0xf]
    %v899 = vld [vmem:[#allocation4 + $0x90] sm:$0xf]
    %v900 = vld [vmem:[#allocation4 + $0x94] sm:$0xf]
    %v901 = vld [vmem:[#allocation4 + $0x98] sm:$0xf]
    %v902 = vld [vmem:[#allocation4 + $0x9c] sm:$0xf]
    %v903 = vld [vmem:[#allocation4 + $0xa0] sm:$0xf]
    %v904 = vld [vmem:[#allocation4 + $0xa4] sm:$0xf]
    %v905 = vld [vmem:[#allocation4 + $0xa8] sm:$0xf]
    %v906 = vld [vmem:[#allocation4 + $0xac] sm:$0xf]
    %v907 = vld [vmem:[#allocation4 + $0xb0] sm:$0xf]
    %v908 = vld [vmem:[#allocation4 + $0xb4] sm:$0xf]
    %v909 = vld [vmem:[#allocation4 + $0xb8] sm:$0xf]
    %v910 = vld [vmem:[#allocation4 + $0xbc] sm:$0xf]
    %v911 = vld [vmem:[#allocation4 + $0xc0] sm:$0xf]
    %v912 = vld [vmem:[#allocation4 + $0xc4] sm:$0xf]
    %v913 = vld [vmem:[#allocation4 + $0xc8] sm:$0xf]
    %v914 = vld [vmem:[#allocation4 + $0xcc] sm:$0xf]
    %v915 = vld [vmem:[#allocation4 + $0xd0] sm:$0xf]
    %v916 = vld [vmem:[#allocation4 + $0xd4] sm:$0xf]
    %v917 = vld [vmem:[#allocation4 + $0xd8] sm:$0xf]
    %v918 = vld [vmem:[#allocation4 + $0xdc] sm:$0xf]
    %v919 = vld [vmem:[#allocation4 + $0xe0] sm:$0xf]
    %v920 = vld [vmem:[#allocation4 + $0xe4] sm:$0xf]
    %v921 = vld [vmem:[#allocation4 + $0xe8] sm:$0xf]
    %v922 = vld [vmem:[#allocation4 + $0xec] sm:$0xf]
    %v923 = vld [vmem:[#allocation4 + $0xf0] sm:$0xf]
    %v924 = vld [vmem:[#allocation4 + $0xf4] sm:$0xf]
    %v925 = vld [vmem:[#allocation4 + $0xf8] sm:$0xf]
    %v926 = vld [vmem:[#allocation4 + $0xfc] sm:$0xf]
    %v927 = vld [vmem:[%s6] sm:$0x1]
    %v929 = vlaneseq
    %v930 = vshrl.u32 %v929, 7
    %v931 = vsub.s32 0, %v930
    %v932 = vrot.slane %v927, %v931
    %v998 = vunpack.c.l.b16 %v863
    %v999 = vunpack.c.l.b16 %v864
    %v1000 = vunpack.c.l.b16 %v865
    %v1001 = vunpack.c.l.b16 %v866
    %v1002 = vunpack.c.l.b16 %v867
    %v1003 = vunpack.c.l.b16 %v868
    %v1004 = vunpack.c.l.b16 %v869
    %v1005 = vunpack.c.l.b16 %v870
    %v1006 = vunpack.c.l.b16 %v871
    %v1007 = vunpack.c.l.b16 %v872
    %v1008 = vunpack.c.l.b16 %v873
    %v1009 = vunpack.c.l.b16 %v874
    %v1010 = vunpack.c.l.b16 %v875
    %v1011 = vunpack.c.l.b16 %v876
    %v1012 = vunpack.c.l.b16 %v877
    %v1013 = vunpack.c.l.b16 %v878
    %v1014 = vunpack.c.l.b16 %v879
    %v1015 = vunpack.c.l.b16 %v880
    %v1016 = vunpack.c.l.b16 %v881
    %v1017 = vunpack.c.l.b16 %v882
    %v1018 = vunpack.c.l.b16 %v883
    %v1019 = vunpack.c.l.b16 %v884
    %v1020 = vunpack.c.l.b16 %v885
    %v1021 = vunpack.c.l.b16 %v886
    %v1022 = vunpack.c.l.b16 %v887
    %v1023 = vunpack.c.l.b16 %v888
    %v1024 = vunpack.c.l.b16 %v889
    %v1025 = vunpack.c.l.b16 %v890
    %v1026 = vunpack.c.l.b16 %v891
    %v1027 = vunpack.c.l.b16 %v892
    %v1028 = vunpack.c.l.b16 %v893
    %v1029 = vunpack.c.l.b16 %v894
    %v1030 = vunpack.c.l.b16 %v895
    %v1031 = vunpack.c.l.b16 %v896
    %v1032 = vunpack.c.l.b16 %v897
    %v1033 = vunpack.c.l.b16 %v898
    %v1034 = vunpack.c.l.b16 %v899
    %v1035 = vunpack.c.l.b16 %v900
    %v1036 = vunpack.c.l.b16 %v901
    %v1037 = vunpack.c.l.b16 %v902
    %v1038 = vunpack.c.l.b16 %v903
    %v1039 = vunpack.c.l.b16 %v904
    %v1040 = vunpack.c.l.b16 %v905
    %v1041 = vunpack.c.l.b16 %v906
    %v1042 = vunpack.c.l.b16 %v907
    %v1043 = vunpack.c.l.b16 %v908
    %v1044 = vunpack.c.l.b16 %v909
    %v1045 = vunpack.c.l.b16 %v910
    %v1046 = vunpack.c.l.b16 %v911
    %v1047 = vunpack.c.l.b16 %v912
    %v1048 = vunpack.c.l.b16 %v913
    %v1049 = vunpack.c.l.b16 %v914
    %v1050 = vunpack.c.l.b16 %v915
    %v1051 = vunpack.c.l.b16 %v916
    %v1052 = vunpack.c.l.b16 %v917
    %v1053 = vunpack.c.l.b16 %v918
    %v1054 = vunpack.c.l.b16 %v919
    %v1055 = vunpack.c.l.b16 %v920
    %v1056 = vunpack.c.l.b16 %v921
    %v1057 = vunpack.c.l.b16 %v922
    %v1058 = vunpack.c.l.b16 %v923
    %v1059 = vunpack.c.l.b16 %v924
    %v1060 = vunpack.c.l.b16 %v925
    %v1061 = vunpack.c.l.b16 %v926
    %v1062 = vpack.c.b16 %v999, %v998
    %v1063 = vpack.c.b16 %v1001, %v1000
    %v1064 = vpack.c.b16 %v1003, %v1002
    %v1065 = vpack.c.b16 %v1005, %v1004
    %v1066 = vpack.c.b16 %v1007, %v1006
    %v1067 = vpack.c.b16 %v1009, %v1008
    %v1068 = vpack.c.b16 %v1011, %v1010
    %v1069 = vpack.c.b16 %v1013, %v1012
    %v1070 = vpack.c.b16 %v1015, %v1014
    %v1071 = vpack.c.b16 %v1017, %v1016
    %v1072 = vpack.c.b16 %v1019, %v1018
    %v1073 = vpack.c.b16 %v1021, %v1020
    %v1074 = vpack.c.b16 %v1023, %v1022
    %v1075 = vpack.c.b16 %v1025, %v1024
    %v1076 = vpack.c.b16 %v1027, %v1026
    %v1077 = vpack.c.b16 %v1029, %v1028
    %v1078 = vpack.c.b16 %v1031, %v1030
    %v1079 = vpack.c.b16 %v1033, %v1032
    %v1080 = vpack.c.b16 %v1035, %v1034
    %v1081 = vpack.c.b16 %v1037, %v1036
    %v1082 = vpack.c.b16 %v1039, %v1038
    %v1083 = vpack.c.b16 %v1041, %v1040
    %v1084 = vpack.c.b16 %v1043, %v1042
    %v1085 = vpack.c.b16 %v1045, %v1044
    %v1086 = vpack.c.b16 %v1047, %v1046
    %v1087 = vpack.c.b16 %v1049, %v1048
    %v1088 = vpack.c.b16 %v1051, %v1050
    %v1089 = vpack.c.b16 %v1053, %v1052
    %v1090 = vpack.c.b16 %v1055, %v1054
    %v1091 = vpack.c.b16 %v1057, %v1056
    %v1092 = vpack.c.b16 %v1059, %v1058
    %v1093 = vpack.c.b16 %v1061, %v1060
    %1126 = vmatprep.subr.bf16.mxu0 0
    %1127 = vmatpush1.bf16.msra.mxu0 %v1069
    %1128 = vmatprep.subr.bf16.mxu0 0
    %1129 = vmatpush1.bf16.msra.mxu0 %v1068
    %1130 = vmatprep.subr.bf16.mxu0 0
    %1131 = vmatpush1.bf16.msra.mxu0 %v1067
    %1132 = vmatprep.subr.bf16.mxu0 0
    %1133 = vmatpush1.bf16.msra.mxu0 %v1066
    %1134 = vmatprep.subr.bf16.mxu0 0
    %1135 = vmatpush1.bf16.msra.mxu0 %v1065
    %1136 = vmatprep.subr.bf16.mxu0 0
    %1137 = vmatpush1.bf16.msra.mxu0 %v1064
    %1138 = vmatprep.subr.bf16.mxu0 0
    %1139 = vmatpush1.bf16.msra.mxu0 %v1063
    %1140 = vmatprep.subr.bf16.mxu0 0
    %1141 = vmatpush1.bf16.msra.mxu0 %v1062
    %1142 = vmatprep.subr.bf16.mxu0 0
    %1143 = vmatpush2.bf16.msra.mxu0 %v1077
    %1144 = vmatprep.subr.bf16.mxu0 0
    %1145 = vmatpush2.bf16.msra.mxu0 %v1076
    %1146 = vmatprep.subr.bf16.mxu0 0
    %1147 = vmatpush2.bf16.msra.mxu0 %v1075
    %1148 = vmatprep.subr.bf16.mxu0 0
    %1149 = vmatpush2.bf16.msra.mxu0 %v1074
    %1150 = vmatprep.subr.bf16.mxu0 0
    %1151 = vmatpush2.bf16.msra.mxu0 %v1073
    %1152 = vmatprep.subr.bf16.mxu0 0
    %1153 = vmatpush2.bf16.msra.mxu0 %v1072
    %1154 = vmatprep.subr.bf16.mxu0 0
    %1155 = vmatpush2.bf16.msra.mxu0 %v1071
    %1156 = vmatprep.subr.bf16.mxu0 0
    %1157 = vmatpush2.bf16.msra.mxu0 %v1070
    %1158 = vmatprep.mubr.bf16.mxu0 %v832
    %1159 = vmatmul.mubr.bf16.gmra.mxu0 %v831
    %v1160 = vpop.f32.mrf.mxu0
    %v1161 = vadd.f32 %v932, %v1160
    %v1162 = vpop.f32.mrf.mxu0
    %v1163 = vpop.f32.mrf.mxu0
    %v1164 = vadd.f32 %v932, %v1163
    %v1165 = vpop.f32.mrf.mxu0
    %1166 = vmatprep.mubr.bf16.mxu0 %v836
    %1167 = vmatmul.mubr.bf16.gmra.mxu0 %v835
    %v1168 = vpop.f32.mrf.mxu0
    %v1169 = vadd.f32 %v932, %v1168
    %v1170 = vpop.f32.mrf.mxu0
    %v1171 = vpop.f32.mrf.mxu0
    %v1172 = vadd.f32 %v932, %v1171
    %v1173 = vpop.f32.mrf.mxu0
    %1174 = vmatprep.mubr.bf16.mxu0 %v840
    %1175 = vmatmul.mubr.bf16.gmra.mxu0 %v839
    %v1176 = vpop.f32.mrf.mxu0
    %v1177 = vadd.f32 %v932, %v1176
    %v1178 = vpop.f32.mrf.mxu0
    %v1179 = vpop.f32.mrf.mxu0
    %v1180 = vadd.f32 %v932, %v1179
    %v1181 = vpop.f32.mrf.mxu0
    %1182 = vmatprep.mubr.bf16.mxu0 %v844
    %1183 = vmatmul.mubr.bf16.gmra.mxu0 %v843
    %v1184 = vpop.f32.mrf.mxu0
    %v1185 = vadd.f32 %v932, %v1184
    %v1186 = vpop.f32.mrf.mxu0
    %v1187 = vpop.f32.mrf.mxu0
    %v1188 = vadd.f32 %v932, %v1187
    %v1189 = vpop.f32.mrf.mxu0
    %1190 = vmatprep.mubr.bf16.mxu0 %v848
    %1191 = vmatmul.mubr.bf16.gmra.mxu0 %v847
    %v1192 = vpop.f32.mrf.mxu0
    %v1193 = vadd.f32 %v932, %v1192
    %v1194 = vpop.f32.mrf.mxu0
    %v1195 = vpop.f32.mrf.mxu0
    %v1196 = vadd.f32 %v932, %v1195
    %v1197 = vpop.f32.mrf.mxu0
    %1198 = vmatprep.mubr.bf16.mxu0 %v852
    %1199 = vmatmul.mubr.bf16.gmra.mxu0 %v851
    %v1200 = vpop.f32.mrf.mxu0
    %v1201 = vadd.f32 %v932, %v1200
    %v1202 = vpop.f32.mrf.mxu0
    %v1203 = vpop.f32.mrf.mxu0
    %v1204 = vadd.f32 %v932, %v1203
    %v1205 = vpop.f32.mrf.mxu0
    %1206 = vmatprep.mubr.bf16.mxu0 %v856
    %1207 = vmatmul.mubr.bf16.gmra.mxu0 %v855
    %v1208 = vpop.f32.mrf.mxu0
    %v1209 = vadd.f32 %v932, %v1208
    %v1210 = vpop.f32.mrf.mxu0
    %v1211 = vpop.f32.mrf.mxu0
    %v1212 = vadd.f32 %v932, %v1211
    %v1213 = vpop.f32.mrf.mxu0
    %1214 = vmatprep.mubr.bf16.mxu0 %v860
    %1215 = vmatmul.mubr.bf16.gmra.mxu0 %v859
    %v1216 = vpop.f32.mrf.mxu0
    %v1217 = vadd.f32 %v932, %v1216
    %v1218 = vpop.f32.mrf.mxu0
    %v1219 = vpop.f32.mrf.mxu0
    %v1220 = vadd.f32 %v932, %v1219
    %v1221 = vpop.f32.mrf.mxu0
    %1222 = vdwg.mxu0
    %1223 = vmatprep.subr.bf16.mxu0 0
    %1224 = vmatpush1.bf16.msra.mxu0 %v1085
    %1225 = vmatprep.subr.bf16.mxu0 0
    %1226 = vmatpush1.bf16.msra.mxu0 %v1084
    %1227 = vmatprep.subr.bf16.mxu0 0
    %1228 = vmatpush1.bf16.msra.mxu0 %v1083
    %1229 = vmatprep.subr.bf16.mxu0 0
    %1230 = vmatpush1.bf16.msra.mxu0 %v1082
    %1231 = vmatprep.subr.bf16.mxu0 0
    %1232 = vmatpush1.bf16.msra.mxu0 %v1081
    %1233 = vmatprep.subr.bf16.mxu0 0
    %1234 = vmatpush1.bf16.msra.mxu0 %v1080
    %1235 = vmatprep.subr.bf16.mxu0 0
    %1236 = vmatpush1.bf16.msra.mxu0 %v1079
    %1237 = vmatprep.subr.bf16.mxu0 0
    %1238 = vmatpush1.bf16.msra.mxu0 %v1078
    %1239 = vmatprep.subr.bf16.mxu0 0
    %1240 = vmatpush2.bf16.msra.mxu0 %v1093
    %1241 = vmatprep.subr.bf16.mxu0 0
    %1242 = vmatpush2.bf16.msra.mxu0 %v1092
    %1243 = vmatprep.subr.bf16.mxu0 0
    %1244 = vmatpush2.bf16.msra.mxu0 %v1091
    %1245 = vmatprep.subr.bf16.mxu0 0
    %1246 = vmatpush2.bf16.msra.mxu0 %v1090
    %1247 = vmatprep.subr.bf16.mxu0 0
    %1248 = vmatpush2.bf16.msra.mxu0 %v1089
    %1249 = vmatprep.subr.bf16.mxu0 0
    %1250 = vmatpush2.bf16.msra.mxu0 %v1088
    %1251 = vmatprep.subr.bf16.mxu0 0
    %1252 = vmatpush2.bf16.msra.mxu0 %v1087
    %1253 = vmatprep.subr.bf16.mxu0 0
    %1254 = vmatpush2.bf16.msra.mxu0 %v1086
    %1255 = vmatprep.mubr.bf16.mxu0 %v834
    %1256 = vmatmul.mubr.bf16.gmra.mxu0 %v833
    %v1257 = vpop.f32.mrf.mxu0
    %v1258 = vadd.f32 %v1161, %v1257
    %v1259 = vpop.f32.mrf.mxu0
    %v1260 = vpop.f32.mrf.mxu0
    %v1261 = vadd.f32 %v1164, %v1260
    %v1262 = vpop.f32.mrf.mxu0
    %1263 = vmatprep.mubr.bf16.mxu0 %v838
    %1264 = vmatmul.mubr.bf16.gmra.mxu0 %v837
    %v1265 = vpop.f32.mrf.mxu0
    %v1266 = vadd.f32 %v1169, %v1265
    %v1267 = vpop.f32.mrf.mxu0
    %v1268 = vpop.f32.mrf.mxu0
    %v1269 = vadd.f32 %v1172, %v1268
    %v1270 = vpop.f32.mrf.mxu0
    %1271 = vmatprep.mubr.bf16.mxu0 %v842
    %1272 = vmatmul.mubr.bf16.gmra.mxu0 %v841
    %v1273 = vpop.f32.mrf.mxu0
    %v1274 = vadd.f32 %v1177, %v1273
    %v1275 = vpop.f32.mrf.mxu0
    %v1276 = vpop.f32.mrf.mxu0
    %v1277 = vadd.f32 %v1180, %v1276
    %v1278 = vpop.f32.mrf.mxu0
    %1279 = vmatprep.mubr.bf16.mxu0 %v846
    %1280 = vmatmul.mubr.bf16.gmra.mxu0 %v845
    %v1281 = vpop.f32.mrf.mxu0
    %v1282 = vadd.f32 %v1185, %v1281
    %v1283 = vpop.f32.mrf.mxu0
    %v1284 = vpop.f32.mrf.mxu0
    %v1285 = vadd.f32 %v1188, %v1284
    %v1286 = vpop.f32.mrf.mxu0
    %1287 = vmatprep.mubr.bf16.mxu0 %v850
    %1288 = vmatmul.mubr.bf16.gmra.mxu0 %v849
    %v1289 = vpop.f32.mrf.mxu0
    %v1290 = vadd.f32 %v1193, %v1289
    %v1291 = vpop.f32.mrf.mxu0
    %v1292 = vpop.f32.mrf.mxu0
    %v1293 = vadd.f32 %v1196, %v1292
    %v1294 = vpop.f32.mrf.mxu0
    %1295 = vmatprep.mubr.bf16.mxu0 %v854
    %1296 = vmatmul.mubr.bf16.gmra.mxu0 %v853
    %v1297 = vpop.f32.mrf.mxu0
    %v1298 = vadd.f32 %v1201, %v1297
    %v1299 = vpop.f32.mrf.mxu0
    %v1300 = vpop.f32.mrf.mxu0
    %v1301 = vadd.f32 %v1204, %v1300
    %v1302 = vpop.f32.mrf.mxu0
    %1303 = vmatprep.mubr.bf16.mxu0 %v858
    %1304 = vmatmul.mubr.bf16.gmra.mxu0 %v857
    %v1305 = vpop.f32.mrf.mxu0
    %v1306 = vadd.f32 %v1209, %v1305
    %v1307 = vpop.f32.mrf.mxu0
    %v1308 = vpop.f32.mrf.mxu0
    %v1309 = vadd.f32 %v1212, %v1308
    %v1310 = vpop.f32.mrf.mxu0
    %1311 = vmatprep.mubr.bf16.mxu0 %v862
    %1312 = vmatmul.mubr.bf16.gmra.mxu0 %v861
    %v1313 = vpop.f32.mrf.mxu0
    %v1314 = vadd.f32 %v1217, %v1313
    %v1315 = vpop.f32.mrf.mxu0
    %v1316 = vpop.f32.mrf.mxu0
    %v1317 = vadd.f32 %v1220, %v1316
    %v1318 = vpop.f32.mrf.mxu0
    %1319 = vdwg.mxu0
    %v1320 = vld [vmem:[#allocation6] sm:$0xf]
    %v1321 = vld [vmem:[#allocation6 + $0x4] sm:$0xf]
    %v1322 = vld [vmem:[#allocation6 + $0x8] sm:$0xf]
    %v1323 = vld [vmem:[#allocation6 + $0xc] sm:$0xf]
    %v1324 = vld [vmem:[#allocation6 + $0x10] sm:$0xf]
    %v1325 = vld [vmem:[#allocation6 + $0x14] sm:$0xf]
    %v1326 = vld [vmem:[#allocation6 + $0x18] sm:$0xf]
    %v1327 = vld [vmem:[#allocation6 + $0x1c] sm:$0xf]
    %v1328 = vld [vmem:[#allocation6 + $0x20] sm:$0xf]
    %v1329 = vld [vmem:[#allocation6 + $0x24] sm:$0xf]
    %v1330 = vld [vmem:[#allocation6 + $0x28] sm:$0xf]
    %v1331 = vld [vmem:[#allocation6 + $0x2c] sm:$0xf]
    %v1332 = vld [vmem:[#allocation6 + $0x30] sm:$0xf]
    %v1333 = vld [vmem:[#allocation6 + $0x34] sm:$0xf]
    %v1334 = vld [vmem:[#allocation6 + $0x38] sm:$0xf]
    %v1335 = vld [vmem:[#allocation6 + $0x3c] sm:$0xf]
    %v1352 = vunpack.c.l.b16 %v1320
    %v1353 = vunpack.c.l.b16 %v1321
    %v1354 = vunpack.c.l.b16 %v1322
    %v1355 = vunpack.c.l.b16 %v1323
    %v1356 = vunpack.c.l.b16 %v1324
    %v1357 = vunpack.c.l.b16 %v1325
    %v1358 = vunpack.c.l.b16 %v1326
    %v1359 = vunpack.c.l.b16 %v1327
    %v1360 = vunpack.c.l.b16 %v1328
    %v1361 = vunpack.c.l.b16 %v1329
    %v1362 = vunpack.c.l.b16 %v1330
    %v1363 = vunpack.c.l.b16 %v1331
    %v1364 = vunpack.c.l.b16 %v1332
    %v1365 = vunpack.c.l.b16 %v1333
    %v1366 = vunpack.c.l.b16 %v1334
    %v1367 = vunpack.c.l.b16 %v1335
    %v1368 = vpack.c.b16 %v1353, %v1352
    %v1369 = vpack.c.b16 %v1355, %v1354
    %v1370 = vpack.c.b16 %v1357, %v1356
    %v1371 = vpack.c.b16 %v1359, %v1358
    %v1372 = vpack.c.b16 %v1361, %v1360
    %v1373 = vpack.c.b16 %v1363, %v1362
    %v1374 = vpack.c.b16 %v1365, %v1364
    %v1375 = vpack.c.b16 %v1367, %v1366
    %1384 = vmatprep.subr.bf16.mxu0 0
    %1385 = vmatpush1.bf16.msra.mxu0 %v1375
    %1386 = vmatprep.subr.bf16.mxu0 0
    %1387 = vmatpush1.bf16.msra.mxu0 %v1374
    %1388 = vmatprep.subr.bf16.mxu0 0
    %1389 = vmatpush1.bf16.msra.mxu0 %v1373
    %1390 = vmatprep.subr.bf16.mxu0 0
    %1391 = vmatpush1.bf16.msra.mxu0 %v1372
    %1392 = vmatprep.subr.bf16.mxu0 0
    %1393 = vmatpush1.bf16.msra.mxu0 %v1371
    %1394 = vmatprep.subr.bf16.mxu0 0
    %1395 = vmatpush1.bf16.msra.mxu0 %v1370
    %1396 = vmatprep.subr.bf16.mxu0 0
    %1397 = vmatpush1.bf16.msra.mxu0 %v1369
    %1398 = vmatprep.subr.bf16.mxu0 0
    %1399 = vmatpush1.bf16.msra.mxu0 %v1368
    %1400 = vmatprep.subr.bf16.mxu0 0
    %1401 = vmatpush2.bf16.msra.mxu0 0
    %1402 = vmatprep.subr.bf16.mxu0 0
    %1403 = vmatpush2.bf16.msra.mxu0 0
    %1404 = vmatprep.subr.bf16.mxu0 0
    %1405 = vmatpush2.bf16.msra.mxu0 0
    %1406 = vmatprep.subr.bf16.mxu0 0
    %1407 = vmatpush2.bf16.msra.mxu0 0
    %1408 = vmatprep.subr.bf16.mxu0 0
    %1409 = vmatpush2.bf16.msra.mxu0 0
    %1410 = vmatprep.subr.bf16.mxu0 0
    %1411 = vmatpush2.bf16.msra.mxu0 0
    %1412 = vmatprep.subr.bf16.mxu0 0
    %1413 = vmatpush2.bf16.msra.mxu0 0
    %1414 = vmatprep.subr.bf16.mxu0 0
    %1415 = vmatpush2.bf16.msra.mxu0 0
    %1416 = vmatprep.mubr.bf16.mxu0 0
    %1417 = vmatmul.mubr.bf16.gmra.mxu0 %v142
    %v1418 = vpop.f32.mrf.mxu0
    %v1419 = vadd.f32 0.0, %v1418
    %v1420 = vpop.f32.mrf.mxu0
    %v1421 = vpop.f32.mrf.mxu0
    %v1422 = vadd.f32 0.0, %v1421
    %v1423 = vpop.f32.mrf.mxu0
    %1424 = vmatprep.mubr.bf16.mxu0 0
    %1425 = vmatmul.mubr.bf16.gmra.mxu0 %v143
    %v1426 = vpop.f32.mrf.mxu0
    %v1427 = vadd.f32 0.0, %v1426
    %v1428 = vpop.f32.mrf.mxu0
    %v1429 = vpop.f32.mrf.mxu0
    %v1430 = vadd.f32 0.0, %v1429
    %v1431 = vpop.f32.mrf.mxu0
    %1432 = vmatprep.mubr.bf16.mxu0 0
    %1433 = vmatmul.mubr.bf16.gmra.mxu0 %v144
    %v1434 = vpop.f32.mrf.mxu0
    %v1435 = vadd.f32 0.0, %v1434
    %v1436 = vpop.f32.mrf.mxu0
    %v1437 = vpop.f32.mrf.mxu0
    %v1438 = vadd.f32 0.0, %v1437
    %v1439 = vpop.f32.mrf.mxu0
    %1440 = vmatprep.mubr.bf16.mxu0 0
    %1441 = vmatmul.mubr.bf16.gmra.mxu0 %v145
    %v1442 = vpop.f32.mrf.mxu0
    %v1443 = vadd.f32 0.0, %v1442
    %v1444 = vpop.f32.mrf.mxu0
    %v1445 = vpop.f32.mrf.mxu0
    %v1446 = vadd.f32 0.0, %v1445
    %v1447 = vpop.f32.mrf.mxu0
    %1448 = vmatprep.mubr.bf16.mxu0 0
    %1449 = vmatmul.mubr.bf16.gmra.mxu0 %v146
    %v1450 = vpop.f32.mrf.mxu0
    %v1451 = vadd.f32 0.0, %v1450
    %v1452 = vpop.f32.mrf.mxu0
    %v1453 = vpop.f32.mrf.mxu0
    %v1454 = vadd.f32 0.0, %v1453
    %v1455 = vpop.f32.mrf.mxu0
    %1456 = vmatprep.mubr.bf16.mxu0 0
    %1457 = vmatmul.mubr.bf16.gmra.mxu0 %v147
    %v1458 = vpop.f32.mrf.mxu0
    %v1459 = vadd.f32 0.0, %v1458
    %v1460 = vpop.f32.mrf.mxu0
    %v1461 = vpop.f32.mrf.mxu0
    %v1462 = vadd.f32 0.0, %v1461
    %v1463 = vpop.f32.mrf.mxu0
    %1464 = vmatprep.mubr.bf16.mxu0 0
    %1465 = vmatmul.mubr.bf16.gmra.mxu0 %v148
    %v1466 = vpop.f32.mrf.mxu0
    %v1467 = vadd.f32 0.0, %v1466
    %v1468 = vpop.f32.mrf.mxu0
    %v1469 = vpop.f32.mrf.mxu0
    %v1470 = vadd.f32 0.0, %v1469
    %v1471 = vpop.f32.mrf.mxu0
    %1472 = vmatprep.mubr.bf16.mxu0 0
    %1473 = vmatmul.mubr.bf16.gmra.mxu0 %v149
    %v1474 = vpop.f32.mrf.mxu0
    %v1475 = vadd.f32 0.0, %v1474
    %v1476 = vpop.f32.mrf.mxu0
    %v1477 = vpop.f32.mrf.mxu0
    %v1478 = vadd.f32 0.0, %v1477
    %v1479 = vpop.f32.mrf.mxu0
    %1480 = vdwg.mxu0
    %v1481 = vadd.f32 %v1258, %v1419
    %v1482 = vadd.f32 %v1261, %v1422
    %v1483 = vadd.f32 %v1266, %v1427
    %v1484 = vadd.f32 %v1269, %v1430
    %v1485 = vadd.f32 %v1274, %v1435
    %v1486 = vadd.f32 %v1277, %v1438
    %v1487 = vadd.f32 %v1282, %v1443
    %v1488 = vadd.f32 %v1285, %v1446
    %v1489 = vadd.f32 %v1290, %v1451
    %v1490 = vadd.f32 %v1293, %v1454
    %v1491 = vadd.f32 %v1298, %v1459
    %v1492 = vadd.f32 %v1301, %v1462
    %v1493 = vadd.f32 %v1306, %v1467
    %v1494 = vadd.f32 %v1309, %v1470
    %v1495 = vadd.f32 %v1314, %v1475
    %v1496 = vadd.f32 %v1317, %v1478
    %1497 = vst [vmem:[%s8] sm:$0xff] %v1481
    %1498 = vst [vmem:[%s8 + $0x8] sm:$0xff] %v1482
    %1499 = vst [vmem:[%s8 + $0x10] sm:$0xff] %v1483
    %1500 = vst [vmem:[%s8 + $0x18] sm:$0xff] %v1484
    %1501 = vst [vmem:[%s8 + $0x20] sm:$0xff] %v1485
    %1502 = vst [vmem:[%s8 + $0x28] sm:$0xff] %v1486
    %1503 = vst [vmem:[%s8 + $0x30] sm:$0xff] %v1487
    %1504 = vst [vmem:[%s8 + $0x38] sm:$0xff] %v1488
    %1505 = vst [vmem:[%s8 + $0x40] sm:$0xff] %v1489
    %1506 = vst [vmem:[%s8 + $0x48] sm:$0xff] %v1490
    %1507 = vst [vmem:[%s8 + $0x50] sm:$0xff] %v1491
    %1508 = vst [vmem:[%s8 + $0x58] sm:$0xff] %v1492
    %1509 = vst [vmem:[%s8 + $0x60] sm:$0xff] %v1493
    %1510 = vst [vmem:[%s8 + $0x68] sm:$0xff] %v1494
    %1511 = vst [vmem:[%s8 + $0x70] sm:$0xff] %v1495
    %1512 = vst [vmem:[%s8 + $0x78] sm:$0xff] %v1496
    // Predicated region
    $region46: #{nnlayer_forward_prepared.1} parent=1 // pred_check
      _
    $region47: #{nnlayer_forward_prepared.1} parent=1 // pred_check_branch
      %1514 = sbr.rel (0) target = $region49
    $region48: #{nnlayer_forward_prepared.1} parent=1 // pred_region
      _
    $region49: #{nnlayer_forward_prepared.1} parent=1 // pred_fallthru
      _
    // Predicated region
    $region50: #{nnlayer_forward_prepared.1} parent=1 // pred_check
      _
    $region51: #{nnlayer_forward_prepared.1} parent=1 // pred_check_branch
      %1516 = sbr.rel (0) target = $region53
    $region52: #{nnlayer_forward_prepared.1} parent=1 // pred_region
      _
    $region53: #{nnlayer_forward_prepared.1} parent=1 // pred_fallthru
      _
    %1517 = vsyncpa [#allocation3], 1
    %1518 = vsyncpa [#allocation5], 1

</llo_original>
